<compile_context>
chip_gen: v7x
topology: tpu7x:2x2x1
jax: 0.10.0
libtpu: 0.0.40
codegen_flags: <defaults>
</compile_context>

<pallas_src>
import functools

import jax
import jax.numpy as jnp
from jax import lax
from jax.experimental import pallas as pl
from jax.experimental.pallas import tpu as pltpu

_NEG_BIG = float(jnp.finfo(jnp.float32).min)


def _cross_attn_kernel(q_ref, k_ref, v_ref, wo_ref, o_ref,
                       m_sc, l_sc, acc_sc, *,
                       heads, tile_m, m_valid, m_has_pad, use_softmax):
    mi = pl.program_id(2)
    n_m = pl.num_programs(2)

    @pl.when(mi == 0)
    def _init():
        if use_softmax:
            m_sc[...] = jnp.full(m_sc.shape, _NEG_BIG, dtype=m_sc.dtype)
            l_sc[...] = jnp.zeros(l_sc.shape, dtype=l_sc.dtype)
        acc_sc[...] = jnp.zeros(acc_sc.shape, dtype=acc_sc.dtype)

    q = q_ref[...]          # (H, TN, Dh) bf16 (scale pre-folded into Wq)
    k = k_ref[...]          # (H, TM, Dh) bf16
    v = v_ref[...]          # (H, TM, Dh) bf16

    # All heads at once: batched matmul over H, contraction over Dh, f32 acc.
    s = jnp.einsum('hnd,hmd->hnm', q, k,
                   preferred_element_type=jnp.float32)   # (H, TN, TM)

    if use_softmax:
        if m_has_pad:
            # Mask key/value pad columns (static M -> cheap lane-dim compare).
            col = mi * tile_m + lax.broadcasted_iota(jnp.int32, s.shape, 2)
            s = jnp.where(col < m_valid, s, _NEG_BIG)
        m_prev = m_sc[...]
        m_new = jnp.maximum(m_prev, jnp.max(s, axis=-1, keepdims=True))
        alpha = jnp.exp(m_prev - m_new)
        p = jnp.exp(s - m_new)
        l_sc[...] = alpha * l_sc[...] + jnp.sum(p, axis=-1, keepdims=True)
        acc_sc[...] = alpha * acc_sc[...] + jnp.einsum(
            'hnm,hmd->hnd', p.astype(v.dtype), v,
            preferred_element_type=jnp.float32)
        m_sc[...] = m_new
    else:
        # Raw (pre-scaled) logits as attention weights; padded K/V rows are
        # zero, so they contribute nothing to the accumulation.
        acc_sc[...] += jnp.einsum('hnm,hmd->hnd', s.astype(v.dtype), v,
                                  preferred_element_type=jnp.float32)

    @pl.when(mi == n_m - 1)
    def _finalize():
        if use_softmax:
            ctx = acc_sc[...] * pl.reciprocal(l_sc[...], approx=True)
        else:
            ctx = acc_sc[...]
        ctx = ctx.astype(wo_ref.dtype)                   # (H, TN, Dh)
        wo = wo_ref[...]                                 # (H, Dh, Dp)
        # Output projection accumulated per head: no lane-axis concatenate,
        # only one (TN, Dp) product live at a time.
        out = jnp.zeros(o_ref.shape, dtype=jnp.float32)
        for h in range(heads):
            out = out + jnp.dot(ctx[h], wo[h],
                                preferred_element_type=jnp.float32)
        o_ref[...] = out.astype(o_ref.dtype)


def _round_up(x, mult):
    return ((x + mult - 1) // mult) * mult


def _pad_axis(a, axis, target):
    pad = target - a.shape[axis]
    if pad <= 0:
        return a
    widths = [(0, 0)] * a.ndim
    widths[axis] = (0, pad)
    return jnp.pad(a, widths)


def _device_kind():
    try:
        return jax.devices()[0].device_kind.lower()
    except Exception:
        return ""


def _vmem_limit_bytes():
    cap = 128 * 1024 * 1024
    try:
        cap = int(getattr(pltpu.get_tpu_info(), "vmem_capacity_bytes", cap))
    except Exception:
        pass
    # 3/4 of physical, capped at 96 MiB: ~96 MiB on v5e/v6e, ~48 MiB on v7x.
    return int(min(96 * 1024 * 1024, (cap * 3) // 4))


def cross_attention(x, m, wq, wk, wv, wo, bo, *, heads, dim_head,
                    softmax=True, compute_dtype=jnp.bfloat16):
    """x: (B, N, D), m: (B, M, D).  Weights in x @ W convention:
       wq/wk/wv: (D, H*Dh), wo: (H*Dh, D), bo: (D,)."""
    B, N, D = x.shape
    _, M, _ = m.shape
    H, Dh = heads, dim_head
    inner = H * Dh
    assert wq.shape == (D, inner) and wk.shape == (D, inner)
    assert wv.shape == (D, inner) and wo.shape == (inner, D)

    # Module semantics: scale = dim ** -0.5 (model dim, not dim_head).
    scale = float(D) ** (-0.5)

    # ---- Projections as plain XLA GEMMs: K/V computed exactly once per batch
    # element (no per-query-tile recompute), bf16 operands/outputs, head-major
    # layout so the kernel never lane-slices sub-128 head chunks.
    xc = x.astype(compute_dtype)
    mc = m.astype(compute_dtype)
    q = xc @ (wq * scale).astype(compute_dtype)            # (B, N, inner)
    k = mc @ wk.astype(compute_dtype)                      # (B, M, inner)
    v = mc @ wv.astype(compute_dtype)                      # (B, M, inner)
    q = q.reshape(B, N, H, Dh).transpose(0, 2, 1, 3)       # (B, H, N, Dh)
    k = k.reshape(B, M, H, Dh).transpose(0, 2, 1, 3)       # (B, H, M, Dh)
    v = v.reshape(B, M, H, Dh).transpose(0, 2, 1, 3)       # (B, H, M, Dh)

    # ---- Tiling / padding (aligned query & key tiles, lane-dense output).
    kind = _device_kind()
    if "v6" in kind and N % 256 == 0:
        tile_n = 256                    # v6e MXU is 2x256x256
    elif N >= 128:
        tile_n = 128
    else:
        tile_n = _round_up(N, 8)        # whole (small) sequence, 8-aligned
    n_p = _round_up(N, tile_n)

    if M >= 512:
        tile_m = 512                    # flash-style M blocks bound VMEM
    else:
        tile_m = _round_up(M, 8)
    m_p = _round_up(M, tile_m)

    d_p = _round_up(D, 128)             # lane-dense (unmasked vst) output

    q = _pad_axis(q, 2, n_p)
    k = _pad_axis(k, 2, m_p)
    v = _pad_axis(v, 2, m_p)

    wo_h = _pad_axis(wo.reshape(H, Dh, D), 2, d_p).astype(compute_dtype)

    kernel = functools.partial(
        _cross_attn_kernel, heads=H, tile_m=tile_m, m_valid=M,
        m_has_pad=(m_p != M), use_softmax=softmax)

    grid = (B, n_p // tile_n, m_p // tile_m)

    grid_spec = pltpu.PrefetchScalarGridSpec(
        num_scalar_prefetch=0,
        grid=grid,
        in_specs=[
            # q tile: constant across the M axis -> stays VMEM-resident.
            pl.BlockSpec((None, H, tile_n, Dh), lambda b, nt, mi: (b, 0, nt, 0)),
            pl.BlockSpec((None, H, tile_m, Dh), lambda b, nt, mi: (b, 0, mi, 0)),
            pl.BlockSpec((None, H, tile_m, Dh), lambda b, nt, mi: (b, 0, mi, 0)),
            # wo is the only in-kernel weight left; constant index -> fetched
            # once.  (Second pipeline buffer is tiny, so no pl.Buffered(1).)
            pl.BlockSpec((H, Dh, d_p),          lambda b, nt, mi: (0, 0, 0)),
        ],
        out_specs=pl.BlockSpec((None, tile_n, d_p), lambda b, nt, mi: (b, nt, 0)),
        scratch_shapes=[
            pltpu.VMEM((H, tile_n, 1), jnp.float32),    # running max
            pltpu.VMEM((H, tile_n, 1), jnp.float32),    # running denominator
            pltpu.VMEM((H, tile_n, Dh), jnp.float32),   # running numerator
        ],
    )

    out = pl.pallas_call(
        kernel,
        out_shape=jax.ShapeDtypeStruct((B, n_p, d_p), compute_dtype),
        grid_spec=grid_spec,
        compiler_params=pltpu.CompilerParams(
            dimension_semantics=("parallel", "parallel", "arbitrary"),
            vmem_limit_bytes=_vmem_limit_bytes()),
    )(q, k, v, wo_h)

    # Strip padding; bias add (to_out Linear bias) fuses trivially in XLA.
    return out[:, :N, :D].astype(jnp.float32) + bo


def _reference(x, m, wq, wk, wv, wo, bo, *, heads, dim_head, softmax=True):
    B, N, D = x.shape
    H, Dh = heads, dim_head
    scale = float(D) ** (-0.5)
    q = (x @ wq).reshape(B, N, H, Dh).transpose(0, 2, 1, 3)
    k = (m @ wk).reshape(B, m.shape[1], H, Dh).transpose(0, 2, 1, 3)
    v = (m @ wv).reshape(B, m.shape[1], H, Dh).transpose(0, 2, 1, 3)
    dots = jnp.einsum('bhid,bhjd->bhij', q, k) * scale
    attn = jax.nn.softmax(dots, axis=-1) if softmax else dots
    out = jnp.einsum('bhij,bhjd->bhid', attn, v)
    out = out.transpose(0, 2, 1, 3).reshape(B, N, H * Dh)
    return out @ wo + bo


def _make_inputs(key, B, N, M, dim, inner_dim):
    kx, km, k1, k2, k3, k4, k5 = jax.random.split(key, 7)
    x = jax.random.normal(kx, (B, N, dim), dtype=jnp.float32)
    m = jax.random.normal(km, (B, M, dim), dtype=jnp.float32)
    wq = jax.random.normal(k1, (dim, inner_dim), dtype=jnp.float32) * 0.05
    wk = jax.random.normal(k2, (dim, inner_dim), dtype=jnp.float32) * 0.05
    wv = jax.random.normal(k3, (dim, inner_dim), dtype=jnp.float32) * 0.05
    wo = jax.random.normal(k4, (inner_dim, dim), dtype=jnp.float32) * 0.05
    bo = jax.random.normal(k5, (dim,), dtype=jnp.float32) * 0.05
    return x, m, wq, wk, wv, wo, bo


def _check(args, *, heads, dim_head, softmax):
    x, m, wq, wk, wv, wo, bo = args
    out = cross_attention(x, m, wq, wk, wv, wo, bo,
                          heads=heads, dim_head=dim_head, softmax=softmax)
    out = jax.block_until_ready(out)
    ref = _reference(x, m, wq, wk, wv, wo, bo,
                     heads=heads, dim_head=dim_head, softmax=softmax)
    assert out.shape == ref.shape
    # bf16 matmul operands with f32 accumulation vs. pure-f32 reference.
    assert jnp.allclose(out, ref, atol=3e-2, rtol=3e-2), "mismatch vs reference"


if __name__ == "__main__":
    # Small, module-consistent shapes.
    B, N, M = 2, 8, 8
    dim, heads, dim_head = 32, 4, 16
    inner_dim = heads * dim_head

    key = jax.random.PRNGKey(0)
    args = _make_inputs(key, B, N, M, dim, inner_dim)

    # Softmax branch (default) and raw-logit branch of the module.
    _check(args, heads=heads, dim_head=dim_head, softmax=True)
    _check(args, heads=heads, dim_head=dim_head, softmax=False)

    # Ragged sequence lengths: exercises N/M padding + key-pad masking path.
    args2 = _make_inputs(jax.random.PRNGKey(0), B, 10, 12, dim, inner_dim)
    _check(args2, heads=heads, dim_head=dim_head, softmax=True)

    print("KERNEL_OK")
</pallas_src>

<mosaic_0001>
module attributes {stable_mosaic.version = 11 : i64} {
  func.func @_cross_attn_kernel(%arg0: i32, %arg1: i32, %arg2: i32, %arg3: memref<1x4x8x16xbf16, #tpu.memory_space<vmem>>, %arg4: memref<1x4x8x16xbf16, #tpu.memory_space<vmem>>, %arg5: memref<1x4x8x16xbf16, #tpu.memory_space<vmem>>, %arg6: memref<4x16x128xbf16, #tpu.memory_space<vmem>>, %arg7: memref<1x8x128xbf16, #tpu.memory_space<vmem>>, %arg8: memref<4x8x1xf32, #tpu.memory_space<vmem>>, %arg9: memref<4x8x1xf32, #tpu.memory_space<vmem>>, %arg10: memref<4x8x16xf32, #tpu.memory_space<vmem>>) attributes {dimension_semantics = [#tpu.dimension_semantics<parallel>, #tpu.dimension_semantics<parallel>, #tpu.dimension_semantics<arbitrary>], iteration_bounds = array<i64: 2, 1, 1>, scalar_prefetch = 0 : i64, scratch_operands = 3 : i64, tpu.core_type = #tpu.core_type<tc>, window_params = [{transform_indices = @transform_0, window_bounds = array<i64: 1, 4, 8, 16>}, {transform_indices = @transform_1, window_bounds = array<i64: 1, 4, 8, 16>}, {transform_indices = @transform_2, window_bounds = array<i64: 1, 4, 8, 16>}, {pipeline_mode = #tpu.pipeline_mode<synchronous>, transform_indices = @transform_3, window_bounds = array<i64: 4, 16, 128>}, {transform_indices = @transform_4, window_bounds = array<i64: 1, 8, 128>}]} {
    %c0_i32 = arith.constant 0 : i32
    %0 = arith.cmpi eq, %arg2, %c0_i32 : i32
    %1 = arith.extui %0 : i1 to i32
    %c0_i32_0 = arith.constant 0 : i32
    %2 = arith.cmpi ne, %1, %c0_i32_0 : i32
    scf.if %2 {
      %cst_35 = arith.constant -3.40282347E+38 : f32
      %36 = vector.broadcast %cst_35 : f32 to vector<4x8x1xf32>
      %c0_36 = arith.constant 0 : index
      %c0_37 = arith.constant 0 : index
      %c0_38 = arith.constant 0 : index
      %37 = vector.load %arg8[%c0_36, %c0_37, %c0_38] : memref<4x8x1xf32, #tpu.memory_space<vmem>>, vector<4x8x1xf32>
      tpu.vector_store %arg8[%c0_36, %c0_37, %c0_38], %36 {strides = array<i32>} : memref<4x8x1xf32, #tpu.memory_space<vmem>>, vector<4x8x1xf32>,
      %cst_39 = arith.constant 0.000000e+00 : f32
      %38 = vector.broadcast %cst_39 : f32 to vector<4x8x1xf32>
      %c0_40 = arith.constant 0 : index
      %c0_41 = arith.constant 0 : index
      %c0_42 = arith.constant 0 : index
      %39 = vector.load %arg9[%c0_40, %c0_41, %c0_42] : memref<4x8x1xf32, #tpu.memory_space<vmem>>, vector<4x8x1xf32>
      tpu.vector_store %arg9[%c0_40, %c0_41, %c0_42], %38 {strides = array<i32>} : memref<4x8x1xf32, #tpu.memory_space<vmem>>, vector<4x8x1xf32>,
      %cst_43 = arith.constant 0.000000e+00 : f32
      %40 = vector.broadcast %cst_43 : f32 to vector<4x8x16xf32>
      %c0_44 = arith.constant 0 : index
      %c0_45 = arith.constant 0 : index
      %c0_46 = arith.constant 0 : index
      %41 = vector.load %arg10[%c0_44, %c0_45, %c0_46] : memref<4x8x16xf32, #tpu.memory_space<vmem>>, vector<4x8x16xf32>
      tpu.vector_store %arg10[%c0_44, %c0_45, %c0_46], %40 {strides = array<i32>} : memref<4x8x16xf32, #tpu.memory_space<vmem>>, vector<4x8x16xf32>,
    } else {
    }
    %c0 = arith.constant 0 : index
    %c0_1 = arith.constant 0 : index
    %c0_2 = arith.constant 0 : index
    %c0_3 = arith.constant 0 : index
    %3 = vector.load %arg3[%c0, %c0_1, %c0_2, %c0_3] : memref<1x4x8x16xbf16, #tpu.memory_space<vmem>>, vector<1x4x8x16xbf16>
    %4 = vector.shape_cast %3 : vector<1x4x8x16xbf16> to vector<4x8x16xbf16>
    %c0_4 = arith.constant 0 : index
    %c0_5 = arith.constant 0 : index
    %c0_6 = arith.constant 0 : index
    %c0_7 = arith.constant 0 : index
    %5 = vector.load %arg4[%c0_4, %c0_5, %c0_6, %c0_7] : memref<1x4x8x16xbf16, #tpu.memory_space<vmem>>, vector<1x4x8x16xbf16>
    %6 = vector.shape_cast %5 : vector<1x4x8x16xbf16> to vector<4x8x16xbf16>
    %c0_8 = arith.constant 0 : index
    %c0_9 = arith.constant 0 : index
    %c0_10 = arith.constant 0 : index
    %c0_11 = arith.constant 0 : index
    %7 = vector.load %arg5[%c0_8, %c0_9, %c0_10, %c0_11] : memref<1x4x8x16xbf16, #tpu.memory_space<vmem>>, vector<1x4x8x16xbf16>
    %8 = vector.shape_cast %7 : vector<1x4x8x16xbf16> to vector<4x8x16xbf16>
    "tpu.trace_start"() <{level = 10 : i32, message = "hnd,hmd->hnm"}> : () -> ()
    %cst = arith.constant dense<0.000000e+00> : vector<4x8x8xf32>
    %9 = tpu.matmul %4, %6, %cst {dimension_numbers = #tpu.dot_dimension_numbers<[2], [2], [1], [1], [0, 0, 0, 1, 1, 1], [0], [0]>} : vector<4x8x16xbf16>, vector<4x8x16xbf16>, vector<4x8x8xf32> -> vector<4x8x8xf32>
    "tpu.trace_stop"() : () -> ()
    %c0_12 = arith.constant 0 : index
    %c0_13 = arith.constant 0 : index
    %c0_14 = arith.constant 0 : index
    %10 = vector.load %arg8[%c0_12, %c0_13, %c0_14] : memref<4x8x1xf32, #tpu.memory_space<vmem>>, vector<4x8x1xf32>
    %cst_15 = arith.constant dense<0xFF800000> : vector<4x8xf32>
    %11 = vector.multi_reduction <maximumf>, %9, %cst_15 [2] : vector<4x8x8xf32> to vector<4x8xf32>
    %12 = vector.shape_cast %11 : vector<4x8xf32> to vector<4x8x1xf32>
    %13 = arith.maximumf %10, %12 : vector<4x8x1xf32>
    %14 = arith.subf %10, %13 : vector<4x8x1xf32>
    %15 = math.exp %14 : vector<4x8x1xf32>
    %16 = vector.broadcast %13 : vector<4x8x1xf32> to vector<4x8x8xf32>
    %17 = arith.subf %9, %16 : vector<4x8x8xf32>
    %18 = math.exp %17 : vector<4x8x8xf32>
    %c0_16 = arith.constant 0 : index
    %c0_17 = arith.constant 0 : index
    %c0_18 = arith.constant 0 : index
    %19 = vector.load %arg9[%c0_16, %c0_17, %c0_18] : memref<4x8x1xf32, #tpu.memory_space<vmem>>, vector<4x8x1xf32>
    %20 = arith.mulf %15, %19 : vector<4x8x1xf32>
    %cst_19 = arith.constant dense<0.000000e+00> : vector<4x8xf32>
    %21 = vector.multi_reduction <add>, %18, %cst_19 [2] : vector<4x8x8xf32> to vector<4x8xf32>
    %22 = vector.shape_cast %21 : vector<4x8xf32> to vector<4x8x1xf32>
    %23 = arith.addf %20, %22 : vector<4x8x1xf32>
    %c0_20 = arith.constant 0 : index
    %c0_21 = arith.constant 0 : index
    %c0_22 = arith.constant 0 : index
    %24 = vector.load %arg9[%c0_20, %c0_21, %c0_22] : memref<4x8x1xf32, #tpu.memory_space<vmem>>, vector<4x8x1xf32>
    tpu.vector_store %arg9[%c0_20, %c0_21, %c0_22], %23 {strides = array<i32>} : memref<4x8x1xf32, #tpu.memory_space<vmem>>, vector<4x8x1xf32>,
    %c0_23 = arith.constant 0 : index
    %c0_24 = arith.constant 0 : index
    %c0_25 = arith.constant 0 : index
    %25 = vector.load %arg10[%c0_23, %c0_24, %c0_25] : memref<4x8x16xf32, #tpu.memory_space<vmem>>, vector<4x8x16xf32>
    %26 = vector.broadcast %15 : vector<4x8x1xf32> to vector<4x8x16xf32>
    %27 = arith.mulf %26, %25 : vector<4x8x16xf32>
    %28 = arith.truncf %18 : vector<4x8x8xf32> to vector<4x8x8xbf16>
    "tpu.trace_start"() <{level = 10 : i32, message = "hnm,hmd->hnd"}> : () -> ()
    %cst_26 = arith.constant dense<0.000000e+00> : vector<4x8x16xf32>
    %29 = tpu.matmul %28, %8, %cst_26 {dimension_numbers = #tpu.dot_dimension_numbers<[2], [1], [1], [2], [0, 0, 0, 1, 1, 2], [0], [0]>} : vector<4x8x8xbf16>, vector<4x8x16xbf16>, vector<4x8x16xf32> -> vector<4x8x16xf32>
    "tpu.trace_stop"() : () -> ()
    %30 = arith.addf %27, %29 : vector<4x8x16xf32>
    %c0_27 = arith.constant 0 : index
    %c0_28 = arith.constant 0 : index
    %c0_29 = arith.constant 0 : index
    %31 = vector.load %arg10[%c0_27, %c0_28, %c0_29] : memref<4x8x16xf32, #tpu.memory_space<vmem>>, vector<4x8x16xf32>
    tpu.vector_store %arg10[%c0_27, %c0_28, %c0_29], %30 {strides = array<i32>} : memref<4x8x16xf32, #tpu.memory_space<vmem>>, vector<4x8x16xf32>,
    %c0_30 = arith.constant 0 : index
    %c0_31 = arith.constant 0 : index
    %c0_32 = arith.constant 0 : index
    %32 = vector.load %arg8[%c0_30, %c0_31, %c0_32] : memref<4x8x1xf32, #tpu.memory_space<vmem>>, vector<4x8x1xf32>
    tpu.vector_store %arg8[%c0_30, %c0_31, %c0_32], %13 {strides = array<i32>} : memref<4x8x1xf32, #tpu.memory_space<vmem>>, vector<4x8x1xf32>,
    %c0_i32_33 = arith.constant 0 : i32
    %33 = arith.cmpi eq, %arg2, %c0_i32_33 : i32
    %34 = arith.extui %33 : i1 to i32
    %c0_i32_34 = arith.constant 0 : i32
    %35 = arith.cmpi ne, %34, %c0_i32_34 : i32
    scf.if %35 {
      %c0_35 = arith.constant 0 : index
      %c0_36 = arith.constant 0 : index
      %c0_37 = arith.constant 0 : index
      %36 = vector.load %arg10[%c0_35, %c0_36, %c0_37] : memref<4x8x16xf32, #tpu.memory_space<vmem>>, vector<4x8x16xf32>
      %c0_38 = arith.constant 0 : index
      %c0_39 = arith.constant 0 : index
      %c0_40 = arith.constant 0 : index
      %37 = vector.load %arg9[%c0_38, %c0_39, %c0_40] : memref<4x8x1xf32, #tpu.memory_space<vmem>>, vector<4x8x1xf32>
      %38 = tpu.reciprocal %37 {approx = true} : vector<4x8x1xf32> -> vector<4x8x1xf32>
      %39 = vector.broadcast %38 : vector<4x8x1xf32> to vector<4x8x16xf32>
      %40 = arith.mulf %36, %39 : vector<4x8x16xf32>
      %41 = arith.truncf %40 : vector<4x8x16xf32> to vector<4x8x16xbf16>
      %c0_41 = arith.constant 0 : index
      %c0_42 = arith.constant 0 : index
      %c0_43 = arith.constant 0 : index
      %42 = vector.load %arg6[%c0_41, %c0_42, %c0_43] : memref<4x16x128xbf16, #tpu.memory_space<vmem>>, vector<4x16x128xbf16>
      %cst_44 = arith.constant 0.000000e+00 : f32
      %43 = vector.broadcast %cst_44 : f32 to vector<8x128xf32>
      %44 = vector.extract_strided_slice %41 {offsets = [0, 0, 0], sizes = [1, 8, 16], strides = [1, 1, 1]} : vector<4x8x16xbf16> to vector<1x8x16xbf16>
      %45 = vector.shape_cast %44 : vector<1x8x16xbf16> to vector<8x16xbf16>
      %46 = vector.extract_strided_slice %42 {offsets = [0, 0, 0], sizes = [1, 16, 128], strides = [1, 1, 1]} : vector<4x16x128xbf16> to vector<1x16x128xbf16>
      %47 = vector.shape_cast %46 : vector<1x16x128xbf16> to vector<16x128xbf16>
      %cst_45 = arith.constant dense<0.000000e+00> : vector<8x128xf32>
      %48 = tpu.matmul %45, %47, %cst_45 {dimension_numbers = #tpu.dot_dimension_numbers<[1], [0], [0], [1], [0, 0, 1, 1], [], []>} : vector<8x16xbf16>, vector<16x128xbf16>, vector<8x128xf32> -> vector<8x128xf32>
      %49 = arith.addf %43, %48 : vector<8x128xf32>
      %50 = vector.extract_strided_slice %41 {offsets = [1, 0, 0], sizes = [1, 8, 16], strides = [1, 1, 1]} : vector<4x8x16xbf16> to vector<1x8x16xbf16>
      %51 = vector.shape_cast %50 : vector<1x8x16xbf16> to vector<8x16xbf16>
      %52 = vector.extract_strided_slice %42 {offsets = [1, 0, 0], sizes = [1, 16, 128], strides = [1, 1, 1]} : vector<4x16x128xbf16> to vector<1x16x128xbf16>
      %53 = vector.shape_cast %52 : vector<1x16x128xbf16> to vector<16x128xbf16>
      %cst_46 = arith.constant dense<0.000000e+00> : vector<8x128xf32>
      %54 = tpu.matmul %51, %53, %cst_46 {dimension_numbers = #tpu.dot_dimension_numbers<[1], [0], [0], [1], [0, 0, 1, 1], [], []>} : vector<8x16xbf16>, vector<16x128xbf16>, vector<8x128xf32> -> vector<8x128xf32>
      %55 = arith.addf %49, %54 : vector<8x128xf32>
      %56 = vector.extract_strided_slice %41 {offsets = [2, 0, 0], sizes = [1, 8, 16], strides = [1, 1, 1]} : vector<4x8x16xbf16> to vector<1x8x16xbf16>
      %57 = vector.shape_cast %56 : vector<1x8x16xbf16> to vector<8x16xbf16>
      %58 = vector.extract_strided_slice %42 {offsets = [2, 0, 0], sizes = [1, 16, 128], strides = [1, 1, 1]} : vector<4x16x128xbf16> to vector<1x16x128xbf16>
      %59 = vector.shape_cast %58 : vector<1x16x128xbf16> to vector<16x128xbf16>
      %cst_47 = arith.constant dense<0.000000e+00> : vector<8x128xf32>
      %60 = tpu.matmul %57, %59, %cst_47 {dimension_numbers = #tpu.dot_dimension_numbers<[1], [0], [0], [1], [0, 0, 1, 1], [], []>} : vector<8x16xbf16>, vector<16x128xbf16>, vector<8x128xf32> -> vector<8x128xf32>
      %61 = arith.addf %55, %60 : vector<8x128xf32>
      %62 = vector.extract_strided_slice %41 {offsets = [3, 0, 0], sizes = [1, 8, 16], strides = [1, 1, 1]} : vector<4x8x16xbf16> to vector<1x8x16xbf16>
      %63 = vector.shape_cast %62 : vector<1x8x16xbf16> to vector<8x16xbf16>
      %64 = vector.extract_strided_slice %42 {offsets = [3, 0, 0], sizes = [1, 16, 128], strides = [1, 1, 1]} : vector<4x16x128xbf16> to vector<1x16x128xbf16>
      %65 = vector.shape_cast %64 : vector<1x16x128xbf16> to vector<16x128xbf16>
      %cst_48 = arith.constant dense<0.000000e+00> : vector<8x128xf32>
      %66 = tpu.matmul %63, %65, %cst_48 {dimension_numbers = #tpu.dot_dimension_numbers<[1], [0], [0], [1], [0, 0, 1, 1], [], []>} : vector<8x16xbf16>, vector<16x128xbf16>, vector<8x128xf32> -> vector<8x128xf32>
      %67 = arith.addf %61, %66 : vector<8x128xf32>
      %68 = arith.truncf %67 : vector<8x128xf32> to vector<8x128xbf16>
      %c0_49 = arith.constant 0 : index
      %c0_50 = arith.constant 0 : index
      %c0_51 = arith.constant 0 : index
      %69 = vector.load %arg7[%c0_49, %c0_50, %c0_51] : memref<1x8x128xbf16, #tpu.memory_space<vmem>>, vector<1x8x128xbf16>
      %70 = vector.shape_cast %69 : vector<1x8x128xbf16> to vector<8x128xbf16>
      %71 = vector.shape_cast %68 : vector<8x128xbf16> to vector<1x8x128xbf16>
      tpu.vector_store %arg7[%c0_49, %c0_50, %c0_51], %71 {strides = array<i32>} : memref<1x8x128xbf16, #tpu.memory_space<vmem>>, vector<1x8x128xbf16>,
    } else {
    }
    return
  }
  func.func @transform_0(%arg0: i32, %arg1: i32, %arg2: i32) -> (i32, i32, i32, i32) {
    %c0_i32 = arith.constant 0 : i32
    %c0_i32_0 = arith.constant 0 : i32
    %c0_i32_1 = arith.constant 0 : i32
    return %arg0, %c0_i32, %arg1, %c0_i32_0 : i32, i32, i32, i32
  }
  func.func @transform_1(%arg0: i32, %arg1: i32, %arg2: i32) -> (i32, i32, i32, i32) {
    %c0_i32 = arith.constant 0 : i32
    %c0_i32_0 = arith.constant 0 : i32
    %c0_i32_1 = arith.constant 0 : i32
    return %arg0, %c0_i32, %arg2, %c0_i32_0 : i32, i32, i32, i32
  }
  func.func @transform_2(%arg0: i32, %arg1: i32, %arg2: i32) -> (i32, i32, i32, i32) {
    %c0_i32 = arith.constant 0 : i32
    %c0_i32_0 = arith.constant 0 : i32
    %c0_i32_1 = arith.constant 0 : i32
    return %arg0, %c0_i32, %arg2, %c0_i32_0 : i32, i32, i32, i32
  }
  func.func @transform_3(%arg0: i32, %arg1: i32, %arg2: i32) -> (i32, i32, i32) {
    %c0_i32 = arith.constant 0 : i32
    %c0_i32_0 = arith.constant 0 : i32
    %c0_i32_1 = arith.constant 0 : i32
    %c0_i32_2 = arith.constant 0 : i32
    return %c0_i32, %c0_i32_0, %c0_i32_1 : i32, i32, i32
  }
  func.func @transform_4(%arg0: i32, %arg1: i32, %arg2: i32) -> (i32, i32, i32) {
    %c0_i32 = arith.constant 0 : i32
    %c0_i32_0 = arith.constant 0 : i32
    return %arg0, %arg1, %c0_i32 : i32, i32, i32
  }
}

</mosaic_0001>

<llo_original>
// kernel: tpu_custom_call.1
$region0: #{tpu_custom_call.1}
  #allocation0 [shape = 'u32[]', space=smem, size = 0x4, offset = 0x4, fixed_abs, tag = 'smem constant byte address 0x4 - core index']
  #allocation1 [shape = 'u32[144,128]{1,0:T(1,128)}', space=vmem, size = 0x12000, scoped, tag = 'internal scratch']
  #allocation2 [shape = 'f32[4,8,1]{2,1,0:T(8,128)}', space=vmem, size = 0x4000, scoped, tag = 'scratch operand']
  #allocation3 [shape = 'f32[4,8,1]{2,1,0:T(8,128)}', space=vmem, size = 0x4000, scoped, tag = 'scratch operand']
  #allocation4 [shape = 'f32[4,8,16]{2,1,0:T(8,128)}', space=vmem, size = 0x4000, scoped, tag = 'scratch operand']
  %s0 = inlined_call_operand.hbm [shape: bf16[2,4,8,16], index: 0, kind: input, shape index: {}]
  %s1 = inlined_call_operand.hbm [shape: bf16[2,4,8,16], index: 1, kind: input, shape index: {}]
  %s2 = inlined_call_operand.hbm [shape: bf16[2,4,8,16], index: 2, kind: input, shape index: {}]
  %s3 = inlined_call_operand.hbm [shape: bf16[4,16,128], index: 3, kind: input, shape index: {}]
  %s4 = inlined_call_operand.hbm [shape: bf16[2,8,128], index: 4, kind: output, shape index: {}]
  %s5 = sld [smem:[#allocation0]]
  $region73: #{tpu_custom_call.1} parent=0
    _
  %s7 = ssub.s32 1, %s5
  %s8 = scalar_select 0, %s7, %s5
  $region1: #{tpu_custom_call.1} parent=0
    #allocation5 [shape = 'u8[16384]{0}', space=vmem, size = 0x4000, scoped, tag = 'input window, operand 0']
    #allocation6 [shape = 's32[2]{0}', space=sflag, size = 0x8, scoped, tag = 'scoped memory for tpu_custom_call.1']
    #allocation7 [shape = 's32[2]{0}', space=sflag, size = 0x8, scoped, tag = 'scoped memory for tpu_custom_call.1']
    #allocation8 [shape = 'u8[16384]{0}', space=vmem, size = 0x4000, scoped, tag = 'input window, operand 1']
    #allocation9 [shape = 's32[2]{0}', space=sflag, size = 0x8, scoped, tag = 'scoped memory for tpu_custom_call.1']
    #allocation10 [shape = 'u8[16384]{0}', space=vmem, size = 0x4000, scoped, tag = 'input window, operand 2']
    #allocation11 [shape = 'u8[16384]{0}', space=vmem, size = 0x4000, scoped, tag = 'input window, operand 3, single buffered']
    #allocation12 [shape = 's32[1]{0}', space=sflag, size = 0x4, scoped, tag = 'scoped memory for tpu_custom_call.1']
    #allocation13 [shape = 'u8[4096]{0}', space=vmem, size = 0x1000, scoped, tag = 'output window, operand 0']
    %9 = vsyncpa [#allocation6], 0
    %s10 = scalar_lea.sflag [#allocation6], 1
    %11 = vsyncpa %s10, 0
    %12 = vsyncpa [#allocation9], 0
    %s13 = scalar_lea.sflag [#allocation9], 1
    %14 = vsyncpa %s13, 0
    %15 = vsyncpa [#allocation12], 0
    %16 = vsyncpa [#allocation7], 0
    %s17 = scalar_lea.sflag [#allocation7], 1
    %18 = vsyncpa %s17, 0
    loop: start=0, step=1, limit=4
    $region2: #{tpu_custom_call.1} parent=1 // loop_pre_header
      _
    $region3: #{tpu_custom_call.1} parent=1 // loop_header
      %s20 = sphi 0, %s24
      %p21 = scmp.ge.s32.totalorder %s20, 4
      %s27 = sphi 0, %s46
      %s28 = sphi 0, %s42
      %s29 = sphi 0, %s38
      %s30 = sphi 0, %s27
      %s31 = sphi 0, %s28
      %s32 = sphi 0, %s29
      %s33 = sphi 0, %s30
      %s34 = sphi 0, %s31
      %s35 = sphi 0, %s32
      %s51 = sphi 0, %s53
      %s54 = sphi 0, %s51
      %s55 = sphi 0, %s54
      %s71 = sphi 0, %s55
      %s79 = sphi 0, %s81
      %s82 = sphi 0, %s79
      %s83 = sphi 0, %s82
      %s99 = sphi 0, %s83
      %s107 = sphi 0, %s109
      %s110 = sphi 0, %s107
      %s111 = sphi 0, %s110
      %s127 = sphi 0, %s111
      %s131 = sphi 0, %s131
      %s133 = sphi 0, %s131
      %s134 = sphi 0, %s133
      %s148 = sphi 0, %s134
      %s156 = sphi 0, %s158
      %s159 = sphi 0, %s156
      %s160 = sphi 0, %s159
      %s176 = sphi 0, %s160
    $region4: #{tpu_custom_call.1} parent=1 // loop_header_branch
      %23 = sbr.rel (%p21) target = $region8
    $region5: #{tpu_custom_call.1} parent=1 // loop_body
      %s25 = ssub.s32 %s20, 1
      %s26 = ssub.s32 %s20, 2
      %s36 = sadd.s32 1, %s29
      %p37 = scmp.ge.s32.totalorder %s36, 1
      %s38 = scalar_select %p37, 0, %s36
      %s39 = sadd.s32 1, %s28
      %s40 = scalar_select %p37, %s39, %s28
      %p41 = scmp.ge.s32.totalorder %s40, 1
      %s42 = scalar_select %p41, 0, %s40
      %s43 = sadd.s32 1, %s27
      %s44 = scalar_select %p41, %s43, %s27
      %p45 = scmp.ge.s32.totalorder %s44, 2
      %s46 = scalar_select %p45, 0, %s44
      %s47 = ssub.s32 %s27, %s46
      %s48 = ssub.s32 %s28, %s42
      %s49 = sor.u32 %s47, %s48
      %p50 = scmp.eq.s32.totalorder %s49, 0
      %s52 = sadd.s32 %s51, 1
      %s53 = scalar_select %p50, %s51, %s52
      %p56 = pneg %p50
      %p57 = scmp.eq.s32.totalorder %s20, 1
      %p58 = por %p56, %p57
      %p59 = scmp.ne.s32.totalorder %s51, %s54
      %p60 = scmp.eq.s32.totalorder %s20, 0
      %p61 = por %p59, %p60
      %p62 = scmp.ne.s32.totalorder %s51, %s54
      %p63 = scmp.eq.s32.totalorder %s25, 1
      %p64 = por %p62, %p63
      %p65 = scmp.ne.s32.totalorder %s54, %s55
      %p66 = scmp.eq.s32.totalorder %s25, 0
      %p67 = por %p65, %p66
      %p68 = scmp.ne.s32.totalorder %s54, %s55
      %p69 = scmp.eq.s32.totalorder %s26, 1
      %p70 = por %p68, %p69
      %p72 = scmp.ne.s32.totalorder %s55, %s71
      %p73 = scmp.eq.s32.totalorder %s26, 0
      %p74 = por %p72, %p73
      %s75 = ssub.s32 %s27, %s46
      %s76 = ssub.s32 %s29, %s38
      %s77 = sor.u32 %s75, %s76
      %p78 = scmp.eq.s32.totalorder %s77, 0
      %s80 = sadd.s32 %s79, 1
      %s81 = scalar_select %p78, %s79, %s80
      %p84 = pneg %p78
      %p85 = scmp.eq.s32.totalorder %s20, 1
      %p86 = por %p84, %p85
      %p87 = scmp.ne.s32.totalorder %s79, %s82
      %p88 = scmp.eq.s32.totalorder %s20, 0
      %p89 = por %p87, %p88
      %p90 = scmp.ne.s32.totalorder %s79, %s82
      %p91 = scmp.eq.s32.totalorder %s25, 1
      %p92 = por %p90, %p91
      %p93 = scmp.ne.s32.totalorder %s82, %s83
      %p94 = scmp.eq.s32.totalorder %s25, 0
      %p95 = por %p93, %p94
      %p96 = scmp.ne.s32.totalorder %s82, %s83
      %p97 = scmp.eq.s32.totalorder %s26, 1
      %p98 = por %p96, %p97
      %p100 = scmp.ne.s32.totalorder %s83, %s99
      %p101 = scmp.eq.s32.totalorder %s26, 0
      %p102 = por %p100, %p101
      %s103 = ssub.s32 %s27, %s46
      %s104 = ssub.s32 %s29, %s38
      %s105 = sor.u32 %s103, %s104
      %p106 = scmp.eq.s32.totalorder %s105, 0
      %s108 = sadd.s32 %s107, 1
      %s109 = scalar_select %p106, %s107, %s108
      %p112 = pneg %p106
      %p113 = scmp.eq.s32.totalorder %s20, 1
      %p114 = por %p112, %p113
      %p115 = scmp.ne.s32.totalorder %s107, %s110
      %p116 = scmp.eq.s32.totalorder %s20, 0
      %p117 = por %p115, %p116
      %p118 = scmp.ne.s32.totalorder %s107, %s110
      %p119 = scmp.eq.s32.totalorder %s25, 1
      %p120 = por %p118, %p119
      %p121 = scmp.ne.s32.totalorder %s110, %s111
      %p122 = scmp.eq.s32.totalorder %s25, 0
      %p123 = por %p121, %p122
      %p124 = scmp.ne.s32.totalorder %s110, %s111
      %p125 = scmp.eq.s32.totalorder %s26, 1
      %p126 = por %p124, %p125
      %p128 = scmp.ne.s32.totalorder %s111, %s127
      %p129 = scmp.eq.s32.totalorder %s26, 0
      %p130 = por %p128, %p129
      %s132 = sadd.s32 %s131, 1
      %p135 = scmp.eq.s32.totalorder %s20, 1
      %p136 = scmp.ne.s32.totalorder %s131, %s133
      %p137 = scmp.eq.s32.totalorder %s20, 0
      %p138 = por %p136, %p137
      %p139 = scmp.ne.s32.totalorder %s131, %s133
      %p140 = scmp.eq.s32.totalorder %s25, 1
      %p141 = por %p139, %p140
      %p142 = scmp.ne.s32.totalorder %s133, %s134
      %p143 = scmp.eq.s32.totalorder %s25, 0
      %p144 = por %p142, %p143
      %p145 = scmp.ne.s32.totalorder %s133, %s134
      %p146 = scmp.eq.s32.totalorder %s26, 1
      %p147 = por %p145, %p146
      %p149 = scmp.ne.s32.totalorder %s134, %s148
      %p150 = scmp.eq.s32.totalorder %s26, 0
      %p151 = por %p149, %p150
      %s152 = ssub.s32 %s27, %s46
      %s153 = ssub.s32 %s28, %s42
      %s154 = sor.u32 %s152, %s153
      %p155 = scmp.eq.s32.totalorder %s154, 0
      %s157 = sadd.s32 %s156, 1
      %s158 = scalar_select %p155, %s156, %s157
      %p161 = pneg %p155
      %p162 = scmp.eq.s32.totalorder %s20, 1
      %p163 = por %p161, %p162
      %p164 = scmp.ne.s32.totalorder %s156, %s159
      %p165 = scmp.eq.s32.totalorder %s20, 0
      %p166 = por %p164, %p165
      %p167 = scmp.ne.s32.totalorder %s156, %s159
      %p168 = scmp.eq.s32.totalorder %s25, 1
      %p169 = por %p167, %p168
      %p170 = scmp.ne.s32.totalorder %s159, %s160
      %p171 = scmp.eq.s32.totalorder %s25, 0
      %p172 = por %p170, %p171
      %p173 = scmp.ne.s32.totalorder %s159, %s160
      %p174 = scmp.eq.s32.totalorder %s26, 1
      %p175 = por %p173, %p174
      %p177 = scmp.ne.s32.totalorder %s160, %s176
      %p178 = scmp.eq.s32.totalorder %s26, 0
      %p179 = por %p177, %p178
      %p180 = scmp.le.s32.totalorder 1, %s20
      %p181 = scmp.lt.s32.totalorder %s20, 3
      %p182 = pnand %p180, %p181
      %p183 = pneg %p182
      // Predicated region
      $region9: #{tpu_custom_call.1} parent=5 // pred_check
        _
      $region10: #{tpu_custom_call.1} parent=5 // pred_check_branch
        %185 = sbr.rel (%p182) target = $region12
      $region11: #{tpu_custom_call.1} parent=5 // pred_region
        %s186 = ssub.s32 %s20, 1
        // Predicated region
        $region13: #{tpu_custom_call.1} parent=11 // pred_check
          %p187 = pneg %p144
        $region14: #{tpu_custom_call.1} parent=11 // pred_check_branch
          %189 = sbr.rel (%p187) target = $region16
        $region15: #{tpu_custom_call.1} parent=11 // pred_region
          %s191 = ssub.s32 512, 512
          %192 = vsyncadd [#allocation12], %s191
          %s193 = sshll.u32 [#allocation11], 4
          %s194 = int_to_ptr.vmem [resolvable:$true] %s193
          %199 = dma.hbm_to_vmem [thread:$0]  %s3, 512, %s194, [#allocation12], 64, 64, 4
        $region16: #{tpu_custom_call.1} parent=11 // pred_fallthru
          _
      $region12: #{tpu_custom_call.1} parent=5 // pred_fallthru
        _
      %p200 = scmp.lt.s32.totalorder %s20, 2
      // Predicated region
      $region17: #{tpu_custom_call.1} parent=5 // pred_check
        %p201 = pneg %p200
      $region18: #{tpu_custom_call.1} parent=5 // pred_check_branch
        %203 = sbr.rel (%p201) target = $region20
      $region19: #{tpu_custom_call.1} parent=5 // pred_region
        // Predicated region
        $region21: #{tpu_custom_call.1} parent=19 // pred_check
          %p204 = pneg %p61
        $region22: #{tpu_custom_call.1} parent=19 // pred_check_branch
          %206 = sbr.rel (%p204) target = $region24
        $region23: #{tpu_custom_call.1} parent=19 // pred_region
          %s207 = sand.u32 %s51, 1
          %s208 = scalar_lea.sflag [#allocation6], %s207
          %s209 = sand.u32 %s51, 1
          %s210 = smul.addr %s209, 16
          %s211 = scalar_lea.vmem [#allocation5], %s210
          %s213 = ssub.s32 256, 256
          %214 = vsyncadd %s208, %s213
          %s215 = smul.addr %s27, 4
          %s216 = sadd.s32 %s28, %s215
          %s217 = smul.addr %s216, 64
          %s218 = scalar_lea.hbm %s0, %s217
          %s219 = sshll.u32 %s211, 4
          %s220 = int_to_ptr.vmem [resolvable:$true] %s219
          %225 = dma.hbm_to_vmem [thread:$0]  %s218, 256, %s220, %s208, 64, 64, 4
        $region24: #{tpu_custom_call.1} parent=19 // pred_fallthru
          _
        // Predicated region
        $region25: #{tpu_custom_call.1} parent=19 // pred_check
          %p226 = pneg %p89
        $region26: #{tpu_custom_call.1} parent=19 // pred_check_branch
          %228 = sbr.rel (%p226) target = $region28
        $region27: #{tpu_custom_call.1} parent=19 // pred_region
          %s229 = sand.u32 %s20, 1
          %s230 = scalar_lea.sflag [#allocation9], %s229
          %s231 = sand.u32 %s79, 1
          %s232 = smul.addr %s231, 16
          %s233 = scalar_lea.vmem [#allocation8], %s232
          %s235 = ssub.s32 256, 256
          %236 = vsyncadd %s230, %s235
          %s237 = smul.addr %s27, 4
          %s238 = sadd.s32 %s29, %s237
          %s239 = smul.addr %s238, 64
          %s240 = scalar_lea.hbm %s1, %s239
          %s241 = sshll.u32 %s233, 4
          %s242 = int_to_ptr.vmem [resolvable:$true] %s241
          %247 = dma.hbm_to_vmem [thread:$0]  %s240, 256, %s242, %s230, 64, 64, 4
        $region28: #{tpu_custom_call.1} parent=19 // pred_fallthru
          _
        // Predicated region
        $region29: #{tpu_custom_call.1} parent=19 // pred_check
          %p248 = pneg %p117
        $region30: #{tpu_custom_call.1} parent=19 // pred_check_branch
          %250 = sbr.rel (%p248) target = $region32
        $region31: #{tpu_custom_call.1} parent=19 // pred_region
          %s251 = sand.u32 %s20, 1
          %s252 = scalar_lea.sflag [#allocation9], %s251
          %s253 = sand.u32 %s107, 1
          %s254 = smul.addr %s253, 16
          %s255 = scalar_lea.vmem [#allocation10], %s254
          %s257 = ssub.s32 256, 256
          %258 = vsyncadd %s252, %s257
          %s259 = smul.addr %s27, 4
          %s260 = sadd.s32 %s29, %s259
          %s261 = smul.addr %s260, 64
          %s262 = scalar_lea.hbm %s2, %s261
          %s263 = sshll.u32 %s255, 4
          %s264 = int_to_ptr.vmem [resolvable:$true] %s263
          %269 = dma.hbm_to_vmem [thread:$0]  %s262, 256, %s264, %s252, 64, 64, 4
        $region32: #{tpu_custom_call.1} parent=19 // pred_fallthru
          _
      $region20: #{tpu_custom_call.1} parent=5 // pred_fallthru
        _
      %p270 = scmp.le.s32.totalorder 1, %s20
      %p271 = scmp.lt.s32.totalorder %s20, 3
      %p272 = pnand %p270, %p271
      %p273 = pneg %p272
      // Predicated region
      $region33: #{tpu_custom_call.1} parent=5 // pred_check
        _
      $region34: #{tpu_custom_call.1} parent=5 // pred_check_branch
        %275 = sbr.rel (%p272) target = $region36
      $region35: #{tpu_custom_call.1} parent=5 // pred_region
        %s276 = ssub.s32 %s20, 1
        %s277 = sand.u32 %s54, 1
        %s278 = scalar_lea.sflag [#allocation6], %s277
        %s279 = sand.u32 %s54, 1
        %s280 = smul.addr %s279, 16
        %s281 = scalar_lea.vmem [#allocation5], %s280
        // Predicated region
        $region37: #{tpu_custom_call.1} parent=35 // pred_check
          %p282 = pneg %p67
        $region38: #{tpu_custom_call.1} parent=35 // pred_check_branch
          %284 = sbr.rel (%p282) target = $region40
        $region39: #{tpu_custom_call.1} parent=35 // pred_region
          %285 = dma.done %s278, 256
        $region40: #{tpu_custom_call.1} parent=35 // pred_fallthru
          _
        %s286 = sand.u32 %s25, 1
        %s287 = scalar_lea.sflag [#allocation9], %s286
        %s288 = sand.u32 %s82, 1
        %s289 = smul.addr %s288, 16
        %s290 = scalar_lea.vmem [#allocation8], %s289
        // Predicated region
        $region41: #{tpu_custom_call.1} parent=35 // pred_check
          %p291 = pneg %p95
        $region42: #{tpu_custom_call.1} parent=35 // pred_check_branch
          %293 = sbr.rel (%p291) target = $region44
        $region43: #{tpu_custom_call.1} parent=35 // pred_region
          %294 = dma.done %s287, 256
        $region44: #{tpu_custom_call.1} parent=35 // pred_fallthru
          _
        %s295 = sand.u32 %s25, 1
        %s296 = scalar_lea.sflag [#allocation9], %s295
        %s297 = sand.u32 %s110, 1
        %s298 = smul.addr %s297, 16
        %s299 = scalar_lea.vmem [#allocation10], %s298
        // Predicated region
        $region45: #{tpu_custom_call.1} parent=35 // pred_check
          %p300 = pneg %p123
        $region46: #{tpu_custom_call.1} parent=35 // pred_check_branch
          %302 = sbr.rel (%p300) target = $region48
        $region47: #{tpu_custom_call.1} parent=35 // pred_region
          %303 = dma.done %s296, 256
        $region48: #{tpu_custom_call.1} parent=35 // pred_fallthru
          _
        // Predicated region
        $region49: #{tpu_custom_call.1} parent=35 // pred_check
          %p304 = pneg %p144
        $region50: #{tpu_custom_call.1} parent=35 // pred_check_branch
          %306 = sbr.rel (%p304) target = $region52
        $region51: #{tpu_custom_call.1} parent=35 // pred_region
          %307 = dma.done [#allocation12], 512
        $region52: #{tpu_custom_call.1} parent=35 // pred_fallthru
          _
        %s308 = sand.u32 %s54, 1
        %s309 = scalar_lea.sflag [#allocation6], %s308
        %s310 = sand.u32 %s54, 1
        %s311 = smul.addr %s310, 16
        %s312 = scalar_lea.vmem [#allocation5], %s311
        %p313 = pneg %p67
        %p314 = pneg %p64
        %s315 = sand.u32 %s25, 1
        %s316 = scalar_lea.sflag [#allocation9], %s315
        %s317 = sand.u32 %s82, 1
        %s318 = smul.addr %s317, 16
        %s319 = scalar_lea.vmem [#allocation8], %s318
        %p320 = pneg %p95
        %p321 = pneg %p92
        %s322 = sand.u32 %s25, 1
        %s323 = scalar_lea.sflag [#allocation9], %s322
        %s324 = sand.u32 %s110, 1
        %s325 = smul.addr %s324, 16
        %s326 = scalar_lea.vmem [#allocation10], %s325
        %p327 = pneg %p123
        %p328 = pneg %p120
        %p329 = pneg %p144
        %p330 = pneg %p141
        %p331 = pneg %p172
        %p332 = pneg %p169
        %s333 = sand.u32 %s159, 1
        %s334 = scalar_lea.sflag [#allocation7], %s333
        %s335 = sand.u32 %s159, 1
        %s336 = smul.addr %s335, 4
        %s337 = scalar_lea.vmem [#allocation13], %s336
        %p339 = scmp.eq.s32.totalorder %s32, 0
        // Predicated region
        $region53: #{tpu_custom_call.1} parent=35 // pred_check
          %p340 = pneg %p339
        $region54: #{tpu_custom_call.1} parent=35 // pred_check_branch
          %342 = sbr.rel (%p340) target = $region56
        $region55: #{tpu_custom_call.1} parent=35 // pred_region
          %vm343 = vcmask 7168
          %344 = vst.msk [vmem:[#allocation2] sm:$0xff] %vm343, -3.4028235e+38
          %345 = vst.msk [vmem:[#allocation2 + $0x8] sm:$0xff] %vm343, -3.4028235e+38
          %346 = vst.msk [vmem:[#allocation2 + $0x10] sm:$0xff] %vm343, -3.4028235e+38
          %347 = vst.msk [vmem:[#allocation2 + $0x18] sm:$0xff] %vm343, -3.4028235e+38
          %348 = vst.msk [vmem:[#allocation3] sm:$0xff] %vm343, 0.0
          %349 = vst.msk [vmem:[#allocation3 + $0x8] sm:$0xff] %vm343, 0.0
          %350 = vst.msk [vmem:[#allocation3 + $0x10] sm:$0xff] %vm343, 0.0
          %351 = vst.msk [vmem:[#allocation3 + $0x18] sm:$0xff] %vm343, 0.0
          %vm352 = vcmask 130048
          %353 = vst.msk [vmem:[#allocation4] sm:$0xff] %vm352, 0.0
          %354 = vst.msk [vmem:[#allocation4 + $0x8] sm:$0xff] %vm352, 0.0
          %355 = vst.msk [vmem:[#allocation4 + $0x10] sm:$0xff] %vm352, 0.0
          %356 = vst.msk [vmem:[#allocation4 + $0x18] sm:$0xff] %vm352, 0.0
        $region56: #{tpu_custom_call.1} parent=35 // pred_fallthru
          _
        %v357 = vld [vmem:[%s281] sm:$0xf]
        %v358 = vld [vmem:[%s281 + $0x4] sm:$0xf]
        %v359 = vld [vmem:[%s281 + $0x8] sm:$0xf]
        %v360 = vld [vmem:[%s281 + $0xc] sm:$0xf]
        %v361 = vld [vmem:[%s290] sm:$0xf]
        %v362 = vld [vmem:[%s290 + $0x4] sm:$0xf]
        %v363 = vld [vmem:[%s290 + $0x8] sm:$0xf]
        %v364 = vld [vmem:[%s290 + $0xc] sm:$0xf]
        %v365 = vld [vmem:[%s299] sm:$0xf]
        %v366 = vld [vmem:[%s299 + $0x4] sm:$0xf]
        %v367 = vld [vmem:[%s299 + $0x8] sm:$0xf]
        %v368 = vld [vmem:[%s299 + $0xc] sm:$0xf]
        %vm369 = vcmask 130048
        %v371 = vsel %vm369, %v357, 0
        %v374 = vsel %vm369, %v361, 0
        %376 = vmatprep.subr.bf16.mxu0 0
        %377 = vmatpush1.bf16.xpose.msra.mxu0 %v374
        %378 = vmatprep.subr.bf16.mxu0 0
        %379 = vmatpush1.bf16.xpose.msra.mxu0 0
        %380 = vmatprep.subr.bf16.mxu0 0
        %381 = vmatpush1.bf16.xpose.msra.mxu0 0
        %382 = vmatprep.subr.bf16.mxu0 0
        %383 = vmatpush1.bf16.xpose.msra.mxu0 0
        %384 = vmatprep.subr.bf16.mxu0 0
        %385 = vmatpush1.bf16.xpose.msra.mxu0 0
        %386 = vmatprep.subr.bf16.mxu0 0
        %387 = vmatpush1.bf16.xpose.msra.mxu0 0
        %388 = vmatprep.subr.bf16.mxu0 0
        %389 = vmatpush1.bf16.xpose.msra.mxu0 0
        %390 = vmatprep.subr.bf16.mxu0 0
        %391 = vmatpush1.bf16.xpose.msra.mxu0 0
        %392 = vmatprep.subr.bf16.mxu0 0
        %393 = vmatpush1.bf16.xpose.msra.mxu0 0
        %394 = vmatprep.subr.bf16.mxu0 0
        %395 = vmatpush1.bf16.xpose.msra.mxu0 0
        %396 = vmatprep.subr.bf16.mxu0 0
        %397 = vmatpush1.bf16.xpose.msra.mxu0 0
        %398 = vmatprep.subr.bf16.mxu0 0
        %399 = vmatpush1.bf16.xpose.msra.mxu0 0
        %400 = vmatprep.subr.bf16.mxu0 0
        %401 = vmatpush1.bf16.xpose.msra.mxu0 0
        %402 = vmatprep.subr.bf16.mxu0 0
        %403 = vmatpush1.bf16.xpose.msra.mxu0 0
        %404 = vmatprep.subr.bf16.mxu0 0
        %405 = vmatpush1.bf16.xpose.msra.mxu0 0
        %406 = vmatprep.subr.bf16.mxu0 0
        %407 = vmatpush1.bf16.xpose.msra.mxu0 0
        %408 = vmatprep.mubr.bf16.mxu0 0
        %409 = vmatmul.mubr.bf16.gmra.mrb[0].mxu0 %v371
        %v410 = vpop.f32.mrb[0].mxu0
        %v411 = vadd.f32 0.0, %v410
        %v412 = vpop.f32.mrb[0].mxu0
        %v413 = vpop.f32.mrb[0].mxu0
        %v414 = vpop.f32.mrb[0].mxu0
        %415 = vdwg.mxu0
        %v417 = vsel %vm369, %v358, 0
        %v420 = vsel %vm369, %v362, 0
        %422 = vmatprep.subr.bf16.mxu0 0
        %423 = vmatpush1.bf16.xpose.msra.mxu0 %v420
        %424 = vmatprep.subr.bf16.mxu0 0
        %425 = vmatpush1.bf16.xpose.msra.mxu0 0
        %426 = vmatprep.subr.bf16.mxu0 0
        %427 = vmatpush1.bf16.xpose.msra.mxu0 0
        %428 = vmatprep.subr.bf16.mxu0 0
        %429 = vmatpush1.bf16.xpose.msra.mxu0 0
        %430 = vmatprep.subr.bf16.mxu0 0
        %431 = vmatpush1.bf16.xpose.msra.mxu0 0
        %432 = vmatprep.subr.bf16.mxu0 0
        %433 = vmatpush1.bf16.xpose.msra.mxu0 0
        %434 = vmatprep.subr.bf16.mxu0 0
        %435 = vmatpush1.bf16.xpose.msra.mxu0 0
        %436 = vmatprep.subr.bf16.mxu0 0
        %437 = vmatpush1.bf16.xpose.msra.mxu0 0
        %438 = vmatprep.subr.bf16.mxu0 0
        %439 = vmatpush1.bf16.xpose.msra.mxu0 0
        %440 = vmatprep.subr.bf16.mxu0 0
        %441 = vmatpush1.bf16.xpose.msra.mxu0 0
        %442 = vmatprep.subr.bf16.mxu0 0
        %443 = vmatpush1.bf16.xpose.msra.mxu0 0
        %444 = vmatprep.subr.bf16.mxu0 0
        %445 = vmatpush1.bf16.xpose.msra.mxu0 0
        %446 = vmatprep.subr.bf16.mxu0 0
        %447 = vmatpush1.bf16.xpose.msra.mxu0 0
        %448 = vmatprep.subr.bf16.mxu0 0
        %449 = vmatpush1.bf16.xpose.msra.mxu0 0
        %450 = vmatprep.subr.bf16.mxu0 0
        %451 = vmatpush1.bf16.xpose.msra.mxu0 0
        %452 = vmatprep.subr.bf16.mxu0 0
        %453 = vmatpush1.bf16.xpose.msra.mxu0 0
        %454 = vmatprep.mubr.bf16.mxu0 0
        %455 = vmatmul.mubr.bf16.gmra.mrb[0].mxu0 %v417
        %v456 = vpop.f32.mrb[0].mxu0
        %v457 = vadd.f32 0.0, %v456
        %v458 = vpop.f32.mrb[0].mxu0
        %v459 = vpop.f32.mrb[0].mxu0
        %v460 = vpop.f32.mrb[0].mxu0
        %461 = vdwg.mxu0
        %v463 = vsel %vm369, %v359, 0
        %v466 = vsel %vm369, %v363, 0
        %468 = vmatprep.subr.bf16.mxu0 0
        %469 = vmatpush1.bf16.xpose.msra.mxu0 %v466
        %470 = vmatprep.subr.bf16.mxu0 0
        %471 = vmatpush1.bf16.xpose.msra.mxu0 0
        %472 = vmatprep.subr.bf16.mxu0 0
        %473 = vmatpush1.bf16.xpose.msra.mxu0 0
        %474 = vmatprep.subr.bf16.mxu0 0
        %475 = vmatpush1.bf16.xpose.msra.mxu0 0
        %476 = vmatprep.subr.bf16.mxu0 0
        %477 = vmatpush1.bf16.xpose.msra.mxu0 0
        %478 = vmatprep.subr.bf16.mxu0 0
        %479 = vmatpush1.bf16.xpose.msra.mxu0 0
        %480 = vmatprep.subr.bf16.mxu0 0
        %481 = vmatpush1.bf16.xpose.msra.mxu0 0
        %482 = vmatprep.subr.bf16.mxu0 0
        %483 = vmatpush1.bf16.xpose.msra.mxu0 0
        %484 = vmatprep.subr.bf16.mxu0 0
        %485 = vmatpush1.bf16.xpose.msra.mxu0 0
        %486 = vmatprep.subr.bf16.mxu0 0
        %487 = vmatpush1.bf16.xpose.msra.mxu0 0
        %488 = vmatprep.subr.bf16.mxu0 0
        %489 = vmatpush1.bf16.xpose.msra.mxu0 0
        %490 = vmatprep.subr.bf16.mxu0 0
        %491 = vmatpush1.bf16.xpose.msra.mxu0 0
        %492 = vmatprep.subr.bf16.mxu0 0
        %493 = vmatpush1.bf16.xpose.msra.mxu0 0
        %494 = vmatprep.subr.bf16.mxu0 0
        %495 = vmatpush1.bf16.xpose.msra.mxu0 0
        %496 = vmatprep.subr.bf16.mxu0 0
        %497 = vmatpush1.bf16.xpose.msra.mxu0 0
        %498 = vmatprep.subr.bf16.mxu0 0
        %499 = vmatpush1.bf16.xpose.msra.mxu0 0
        %500 = vmatprep.mubr.bf16.mxu0 0
        %501 = vmatmul.mubr.bf16.gmra.mrb[0].mxu0 %v463
        %v502 = vpop.f32.mrb[0].mxu0
        %v503 = vadd.f32 0.0, %v502
        %v504 = vpop.f32.mrb[0].mxu0
        %v505 = vpop.f32.mrb[0].mxu0
        %v506 = vpop.f32.mrb[0].mxu0
        %507 = vdwg.mxu0
        %v509 = vsel %vm369, %v360, 0
        %v512 = vsel %vm369, %v364, 0
        %514 = vmatprep.subr.bf16.mxu0 0
        %515 = vmatpush1.bf16.xpose.msra.mxu0 %v512
        %516 = vmatprep.subr.bf16.mxu0 0
        %517 = vmatpush1.bf16.xpose.msra.mxu0 0
        %518 = vmatprep.subr.bf16.mxu0 0
        %519 = vmatpush1.bf16.xpose.msra.mxu0 0
        %520 = vmatprep.subr.bf16.mxu0 0
        %521 = vmatpush1.bf16.xpose.msra.mxu0 0
        %522 = vmatprep.subr.bf16.mxu0 0
        %523 = vmatpush1.bf16.xpose.msra.mxu0 0
        %524 = vmatprep.subr.bf16.mxu0 0
        %525 = vmatpush1.bf16.xpose.msra.mxu0 0
        %526 = vmatprep.subr.bf16.mxu0 0
        %527 = vmatpush1.bf16.xpose.msra.mxu0 0
        %528 = vmatprep.subr.bf16.mxu0 0
        %529 = vmatpush1.bf16.xpose.msra.mxu0 0
        %530 = vmatprep.subr.bf16.mxu0 0
        %531 = vmatpush1.bf16.xpose.msra.mxu0 0
        %532 = vmatprep.subr.bf16.mxu0 0
        %533 = vmatpush1.bf16.xpose.msra.mxu0 0
        %534 = vmatprep.subr.bf16.mxu0 0
        %535 = vmatpush1.bf16.xpose.msra.mxu0 0
        %536 = vmatprep.subr.bf16.mxu0 0
        %537 = vmatpush1.bf16.xpose.msra.mxu0 0
        %538 = vmatprep.subr.bf16.mxu0 0
        %539 = vmatpush1.bf16.xpose.msra.mxu0 0
        %540 = vmatprep.subr.bf16.mxu0 0
        %541 = vmatpush1.bf16.xpose.msra.mxu0 0
        %542 = vmatprep.subr.bf16.mxu0 0
        %543 = vmatpush1.bf16.xpose.msra.mxu0 0
        %544 = vmatprep.subr.bf16.mxu0 0
        %545 = vmatpush1.bf16.xpose.msra.mxu0 0
        %546 = vmatprep.mubr.bf16.mxu0 0
        %547 = vmatmul.mubr.bf16.gmra.mrb[0].mxu0 %v509
        %v548 = vpop.f32.mrb[0].mxu0
        %v549 = vadd.f32 0.0, %v548
        %v550 = vpop.f32.mrb[0].mxu0
        %v551 = vpop.f32.mrb[0].mxu0
        %v552 = vpop.f32.mrb[0].mxu0
        %553 = vdwg.mxu0
        %v554 = vld [vmem:[#allocation2] sm:$0xff]
        %v555 = vld [vmem:[#allocation2 + $0x8] sm:$0xff]
        %v556 = vld [vmem:[#allocation2 + $0x10] sm:$0xff]
        %v557 = vld [vmem:[#allocation2 + $0x18] sm:$0xff]
        %vm558 = vcmask 64512
        %v559 = vsel %vm558, %v411, -inf
        %560 = vmax.xlane.f32.xlu0 %v559
        %v561 = vpop.xlane.xlu0 %560
        %v562 = vsel %vm558, %v457, -inf
        %563 = vmax.xlane.f32.xlu0 %v562
        %v564 = vpop.xlane.xlu0 %563
        %v565 = vsel %vm558, %v503, -inf
        %566 = vmax.xlane.f32.xlu0 %v565
        %v567 = vpop.xlane.xlu0 %566
        %v568 = vsel %vm558, %v549, -inf
        %569 = vmax.xlane.f32.xlu0 %v568
        %v570 = vpop.xlane.xlu0 %569
        %v571 = vmax.f32 %v554, %v561
        %v572 = vmax.f32 %v555, %v564
        %v573 = vmax.f32 %v556, %v567
        %v574 = vmax.f32 %v557, %v570
        %v575 = vsub.f32 %v554, %v571
        %v576 = vsub.f32 %v555, %v572
        %v577 = vsub.f32 %v556, %v573
        %v578 = vsub.f32 %v557, %v574
        %v579 = vmul.f32 %v575, 1.442695
        %v580 = vpow.pop %v579
        %v581 = vmul.f32 %v576, 1.442695
        %v582 = vpow.pop %v581
        %v583 = vmul.f32 %v577, 1.442695
        %v584 = vpow.pop %v583
        %v585 = vmul.f32 %v578, 1.442695
        %v586 = vpow.pop %v585
        %588 = vset.pattern.permute.xlu0 0
        %589 = vperm.xlu0 %588, %v571
        %v590 = vpop.permute.xlu0 %589
        %593 = vset.pattern.permute.xlu0 0
        %594 = vperm.xlu0 %593, %v572
        %v595 = vpop.permute.xlu0 %594
        %598 = vset.pattern.permute.xlu0 0
        %599 = vperm.xlu0 %598, %v573
        %v600 = vpop.permute.xlu0 %599
        %603 = vset.pattern.permute.xlu0 0
        %604 = vperm.xlu0 %603, %v574
        %v605 = vpop.permute.xlu0 %604
        %v607 = vsub.f32 %v411, %v590
        %v608 = vsub.f32 %v457, %v595
        %v609 = vsub.f32 %v503, %v600
        %v610 = vsub.f32 %v549, %v605
        %v611 = vmul.f32 %v607, 1.442695
        %v612 = vpow.pop %v611
        %v613 = vmul.f32 %v608, 1.442695
        %v614 = vpow.pop %v613
        %v615 = vmul.f32 %v609, 1.442695
        %v616 = vpow.pop %v615
        %v617 = vmul.f32 %v610, 1.442695
        %v618 = vpow.pop %v617
        %v619 = vld [vmem:[#allocation3] sm:$0xff]
        %v620 = vld [vmem:[#allocation3 + $0x8] sm:$0xff]
        %v621 = vld [vmem:[#allocation3 + $0x10] sm:$0xff]
        %v622 = vld [vmem:[#allocation3 + $0x18] sm:$0xff]
        %v623 = vmul.f32 %v580, %v619
        %v624 = vmul.f32 %v582, %v620
        %v625 = vmul.f32 %v584, %v621
        %v626 = vmul.f32 %v586, %v622
        %v627 = vsel %vm558, %v612, 0.0
        %628 = vadd.xlane.f32.xlu0 %v627
        %v629 = vpop.xlane.xlu0 %628
        %v630 = vsel %vm558, %v614, 0.0
        %631 = vadd.xlane.f32.xlu0 %v630
        %v632 = vpop.xlane.xlu0 %631
        %v633 = vsel %vm558, %v616, 0.0
        %634 = vadd.xlane.f32.xlu0 %v633
        %v635 = vpop.xlane.xlu0 %634
        %v636 = vsel %vm558, %v618, 0.0
        %637 = vadd.xlane.f32.xlu0 %v636
        %v638 = vpop.xlane.xlu0 %637
        %v639 = vadd.f32 %v623, %v629
        %v640 = vadd.f32 %v624, %v632
        %v641 = vadd.f32 %v625, %v635
        %v642 = vadd.f32 %v626, %v638
        %vm643 = vcmask 7168
        %644 = vst.msk [vmem:[#allocation3] sm:$0xff] %vm643, %v639
        %645 = vst.msk [vmem:[#allocation3 + $0x8] sm:$0xff] %vm643, %v640
        %646 = vst.msk [vmem:[#allocation3 + $0x10] sm:$0xff] %vm643, %v641
        %647 = vst.msk [vmem:[#allocation3 + $0x18] sm:$0xff] %vm643, %v642
        %v648 = vld [vmem:[#allocation4] sm:$0xff]
        %v649 = vld [vmem:[#allocation4 + $0x8] sm:$0xff]
        %v650 = vld [vmem:[#allocation4 + $0x10] sm:$0xff]
        %v651 = vld [vmem:[#allocation4 + $0x18] sm:$0xff]
        %653 = vset.pattern.permute.xlu0 0
        %654 = vperm.xlu0 %653, %v580
        %v655 = vpop.permute.xlu0 %654
        %658 = vset.pattern.permute.xlu0 0
        %659 = vperm.xlu0 %658, %v582
        %v660 = vpop.permute.xlu0 %659
        %663 = vset.pattern.permute.xlu0 0
        %664 = vperm.xlu0 %663, %v584
        %v665 = vpop.permute.xlu0 %664
        %668 = vset.pattern.permute.xlu0 0
        %669 = vperm.xlu0 %668, %v586
        %v670 = vpop.permute.xlu0 %669
        %v672 = vmul.f32 %v655, %v648
        %v673 = vmul.f32 %v660, %v649
        %v674 = vmul.f32 %v665, %v650
        %v675 = vmul.f32 %v670, %v651
        %v676 = vpack.c.bf16 %v612, %v612
        %v677 = vpack.c.bf16 %v614, %v614
        %v678 = vpack.c.bf16 %v616, %v616
        %v679 = vpack.c.bf16 %v618, %v618
        %v681 = vsel %vm558, %v676, 0
        %vm683 = vcmask 1043456
        %v685 = vsel %vm683, %v365, 0
        %687 = vmatprep.subr.bf16.mxu0 0
        %688 = vmatpush1.bf16.msra.mxu0 %v685
        %689 = vmatprep.subr.bf16.mxu0 0
        %690 = vmatpush1.bf16.msra.mxu0 0
        %691 = vmatprep.subr.bf16.mxu0 0
        %692 = vmatpush1.bf16.msra.mxu0 0
        %693 = vmatprep.subr.bf16.mxu0 0
        %694 = vmatpush1.bf16.msra.mxu0 0
        %695 = vmatprep.subr.bf16.mxu0 0
        %696 = vmatpush1.bf16.msra.mxu0 0
        %697 = vmatprep.subr.bf16.mxu0 0
        %698 = vmatpush1.bf16.msra.mxu0 0
        %699 = vmatprep.subr.bf16.mxu0 0
        %700 = vmatpush1.bf16.msra.mxu0 0
        %701 = vmatprep.subr.bf16.mxu0 0
        %702 = vmatpush1.bf16.msra.mxu0 0
        %703 = vmatprep.subr.bf16.mxu0 0
        %704 = vmatpush1.bf16.msra.mxu0 0
        %705 = vmatprep.subr.bf16.mxu0 0
        %706 = vmatpush1.bf16.msra.mxu0 0
        %707 = vmatprep.subr.bf16.mxu0 0
        %708 = vmatpush1.bf16.msra.mxu0 0
        %709 = vmatprep.subr.bf16.mxu0 0
        %710 = vmatpush1.bf16.msra.mxu0 0
        %711 = vmatprep.subr.bf16.mxu0 0
        %712 = vmatpush1.bf16.msra.mxu0 0
        %713 = vmatprep.subr.bf16.mxu0 0
        %714 = vmatpush1.bf16.msra.mxu0 0
        %715 = vmatprep.subr.bf16.mxu0 0
        %716 = vmatpush1.bf16.msra.mxu0 0
        %717 = vmatprep.subr.bf16.mxu0 0
        %718 = vmatpush1.bf16.msra.mxu0 0
        %719 = vmatprep.mubr.bf16.mxu0 0
        %720 = vmatmul.mubr.bf16.gmra.mrb[0].mxu0 %v681
        %v721 = vpop.f32.mrb[0].mxu0
        %v722 = vadd.f32 0.0, %v721
        %v723 = vpop.f32.mrb[0].mxu0
        %v724 = vpop.f32.mrb[0].mxu0
        %v725 = vpop.f32.mrb[0].mxu0
        %726 = vdwg.mxu0
        %v728 = vsel %vm558, %v677, 0
        %v731 = vsel %vm683, %v366, 0
        %733 = vmatprep.subr.bf16.mxu0 0
        %734 = vmatpush1.bf16.msra.mxu0 %v731
        %735 = vmatprep.subr.bf16.mxu0 0
        %736 = vmatpush1.bf16.msra.mxu0 0
        %737 = vmatprep.subr.bf16.mxu0 0
        %738 = vmatpush1.bf16.msra.mxu0 0
        %739 = vmatprep.subr.bf16.mxu0 0
        %740 = vmatpush1.bf16.msra.mxu0 0
        %741 = vmatprep.subr.bf16.mxu0 0
        %742 = vmatpush1.bf16.msra.mxu0 0
        %743 = vmatprep.subr.bf16.mxu0 0
        %744 = vmatpush1.bf16.msra.mxu0 0
        %745 = vmatprep.subr.bf16.mxu0 0
        %746 = vmatpush1.bf16.msra.mxu0 0
        %747 = vmatprep.subr.bf16.mxu0 0
        %748 = vmatpush1.bf16.msra.mxu0 0
        %749 = vmatprep.subr.bf16.mxu0 0
        %750 = vmatpush1.bf16.msra.mxu0 0
        %751 = vmatprep.subr.bf16.mxu0 0
        %752 = vmatpush1.bf16.msra.mxu0 0
        %753 = vmatprep.subr.bf16.mxu0 0
        %754 = vmatpush1.bf16.msra.mxu0 0
        %755 = vmatprep.subr.bf16.mxu0 0
        %756 = vmatpush1.bf16.msra.mxu0 0
        %757 = vmatprep.subr.bf16.mxu0 0
        %758 = vmatpush1.bf16.msra.mxu0 0
        %759 = vmatprep.subr.bf16.mxu0 0
        %760 = vmatpush1.bf16.msra.mxu0 0
        %761 = vmatprep.subr.bf16.mxu0 0
        %762 = vmatpush1.bf16.msra.mxu0 0
        %763 = vmatprep.subr.bf16.mxu0 0
        %764 = vmatpush1.bf16.msra.mxu0 0
        %765 = vmatprep.mubr.bf16.mxu0 0
        %766 = vmatmul.mubr.bf16.gmra.mrb[0].mxu0 %v728
        %v767 = vpop.f32.mrb[0].mxu0
        %v768 = vadd.f32 0.0, %v767
        %v769 = vpop.f32.mrb[0].mxu0
        %v770 = vpop.f32.mrb[0].mxu0
        %v771 = vpop.f32.mrb[0].mxu0
        %772 = vdwg.mxu0
        %v774 = vsel %vm558, %v678, 0
        %v777 = vsel %vm683, %v367, 0
        %779 = vmatprep.subr.bf16.mxu0 0
        %780 = vmatpush1.bf16.msra.mxu0 %v777
        %781 = vmatprep.subr.bf16.mxu0 0
        %782 = vmatpush1.bf16.msra.mxu0 0
        %783 = vmatprep.subr.bf16.mxu0 0
        %784 = vmatpush1.bf16.msra.mxu0 0
        %785 = vmatprep.subr.bf16.mxu0 0
        %786 = vmatpush1.bf16.msra.mxu0 0
        %787 = vmatprep.subr.bf16.mxu0 0
        %788 = vmatpush1.bf16.msra.mxu0 0
        %789 = vmatprep.subr.bf16.mxu0 0
        %790 = vmatpush1.bf16.msra.mxu0 0
        %791 = vmatprep.subr.bf16.mxu0 0
        %792 = vmatpush1.bf16.msra.mxu0 0
        %793 = vmatprep.subr.bf16.mxu0 0
        %794 = vmatpush1.bf16.msra.mxu0 0
        %795 = vmatprep.subr.bf16.mxu0 0
        %796 = vmatpush1.bf16.msra.mxu0 0
        %797 = vmatprep.subr.bf16.mxu0 0
        %798 = vmatpush1.bf16.msra.mxu0 0
        %799 = vmatprep.subr.bf16.mxu0 0
        %800 = vmatpush1.bf16.msra.mxu0 0
        %801 = vmatprep.subr.bf16.mxu0 0
        %802 = vmatpush1.bf16.msra.mxu0 0
        %803 = vmatprep.subr.bf16.mxu0 0
        %804 = vmatpush1.bf16.msra.mxu0 0
        %805 = vmatprep.subr.bf16.mxu0 0
        %806 = vmatpush1.bf16.msra.mxu0 0
        %807 = vmatprep.subr.bf16.mxu0 0
        %808 = vmatpush1.bf16.msra.mxu0 0
        %809 = vmatprep.subr.bf16.mxu0 0
        %810 = vmatpush1.bf16.msra.mxu0 0
        %811 = vmatprep.mubr.bf16.mxu0 0
        %812 = vmatmul.mubr.bf16.gmra.mrb[0].mxu0 %v774
        %v813 = vpop.f32.mrb[0].mxu0
        %v814 = vadd.f32 0.0, %v813
        %v815 = vpop.f32.mrb[0].mxu0
        %v816 = vpop.f32.mrb[0].mxu0
        %v817 = vpop.f32.mrb[0].mxu0
        %818 = vdwg.mxu0
        %v820 = vsel %vm558, %v679, 0
        %v823 = vsel %vm683, %v368, 0
        %825 = vmatprep.subr.bf16.mxu0 0
        %826 = vmatpush1.bf16.msra.mxu0 %v823
        %827 = vmatprep.subr.bf16.mxu0 0
        %828 = vmatpush1.bf16.msra.mxu0 0
        %829 = vmatprep.subr.bf16.mxu0 0
        %830 = vmatpush1.bf16.msra.mxu0 0
        %831 = vmatprep.subr.bf16.mxu0 0
        %832 = vmatpush1.bf16.msra.mxu0 0
        %833 = vmatprep.subr.bf16.mxu0 0
        %834 = vmatpush1.bf16.msra.mxu0 0
        %835 = vmatprep.subr.bf16.mxu0 0
        %836 = vmatpush1.bf16.msra.mxu0 0
        %837 = vmatprep.subr.bf16.mxu0 0
        %838 = vmatpush1.bf16.msra.mxu0 0
        %839 = vmatprep.subr.bf16.mxu0 0
        %840 = vmatpush1.bf16.msra.mxu0 0
        %841 = vmatprep.subr.bf16.mxu0 0
        %842 = vmatpush1.bf16.msra.mxu0 0
        %843 = vmatprep.subr.bf16.mxu0 0
        %844 = vmatpush1.bf16.msra.mxu0 0
        %845 = vmatprep.subr.bf16.mxu0 0
        %846 = vmatpush1.bf16.msra.mxu0 0
        %847 = vmatprep.subr.bf16.mxu0 0
        %848 = vmatpush1.bf16.msra.mxu0 0
        %849 = vmatprep.subr.bf16.mxu0 0
        %850 = vmatpush1.bf16.msra.mxu0 0
        %851 = vmatprep.subr.bf16.mxu0 0
        %852 = vmatpush1.bf16.msra.mxu0 0
        %853 = vmatprep.subr.bf16.mxu0 0
        %854 = vmatpush1.bf16.msra.mxu0 0
        %855 = vmatprep.subr.bf16.mxu0 0
        %856 = vmatpush1.bf16.msra.mxu0 0
        %857 = vmatprep.mubr.bf16.mxu0 0
        %858 = vmatmul.mubr.bf16.gmra.mrb[0].mxu0 %v820
        %v859 = vpop.f32.mrb[0].mxu0
        %v860 = vadd.f32 0.0, %v859
        %v861 = vpop.f32.mrb[0].mxu0
        %v862 = vpop.f32.mrb[0].mxu0
        %v863 = vpop.f32.mrb[0].mxu0
        %864 = vdwg.mxu0
        %v865 = vadd.f32 %v672, %v722
        %v866 = vadd.f32 %v673, %v768
        %v867 = vadd.f32 %v674, %v814
        %v868 = vadd.f32 %v675, %v860
        %869 = vst.msk [vmem:[#allocation4] sm:$0xff] %vm369, %v865
        %870 = vst.msk [vmem:[#allocation4 + $0x8] sm:$0xff] %vm369, %v866
        %871 = vst.msk [vmem:[#allocation4 + $0x10] sm:$0xff] %vm369, %v867
        %872 = vst.msk [vmem:[#allocation4 + $0x18] sm:$0xff] %vm369, %v868
        %873 = vst.msk [vmem:[#allocation2] sm:$0xff] %vm643, %v571
        %874 = vst.msk [vmem:[#allocation2 + $0x8] sm:$0xff] %vm643, %v572
        %875 = vst.msk [vmem:[#allocation2 + $0x10] sm:$0xff] %vm643, %v573
        %876 = vst.msk [vmem:[#allocation2 + $0x18] sm:$0xff] %vm643, %v574
        // Predicated region
        $region57: #{tpu_custom_call.1} parent=35 // pred_check
          %p877 = pneg %p339
        $region58: #{tpu_custom_call.1} parent=35 // pred_check_branch
          %879 = sbr.rel (%p877) target = $region60
        $region59: #{tpu_custom_call.1} parent=35 // pred_region
          %v880 = vld [vmem:[#allocation4] sm:$0xff]
          %v881 = vld [vmem:[#allocation4 + $0x8] sm:$0xff]
          %v882 = vld [vmem:[#allocation4 + $0x10] sm:$0xff]
          %v883 = vld [vmem:[#allocation4 + $0x18] sm:$0xff]
          %v884 = vld [vmem:[#allocation3] sm:$0xff]
          %v885 = vld [vmem:[#allocation3 + $0x8] sm:$0xff]
          %v886 = vld [vmem:[#allocation3 + $0x10] sm:$0xff]
          %v887 = vld [vmem:[#allocation3 + $0x18] sm:$0xff]
          %v888 = vrcp.pop %v884
          %v889 = vrcp.pop %v885
          %v890 = vrcp.pop %v886
          %v891 = vrcp.pop %v887
          %893 = vset.pattern.permute.xlu0 0
          %894 = vperm.xlu0 %893, %v888
          %v895 = vpop.permute.xlu0 %894
          %898 = vset.pattern.permute.xlu0 0
          %899 = vperm.xlu0 %898, %v889
          %v900 = vpop.permute.xlu0 %899
          %903 = vset.pattern.permute.xlu0 0
          %904 = vperm.xlu0 %903, %v890
          %v905 = vpop.permute.xlu0 %904
          %908 = vset.pattern.permute.xlu0 0
          %909 = vperm.xlu0 %908, %v891
          %v910 = vpop.permute.xlu0 %909
          %v912 = vmul.f32 %v880, %v895
          %v913 = vmul.f32 %v881, %v900
          %v914 = vmul.f32 %v882, %v905
          %v915 = vmul.f32 %v883, %v910
          %v916 = vpack.c.bf16 %v912, %v912
          %v917 = vpack.c.bf16 %v913, %v913
          %v918 = vpack.c.bf16 %v914, %v914
          %v919 = vpack.c.bf16 %v915, %v915
          %v920 = vld [vmem:[#allocation11] sm:$0xf]
          %v921 = vld [vmem:[#allocation11 + $0x4] sm:$0xf]
          %v922 = vld [vmem:[#allocation11 + $0x8] sm:$0xf]
          %v923 = vld [vmem:[#allocation11 + $0xc] sm:$0xf]
          %v924 = vld [vmem:[#allocation11 + $0x10] sm:$0xf]
          %v925 = vld [vmem:[#allocation11 + $0x14] sm:$0xf]
          %v926 = vld [vmem:[#allocation11 + $0x18] sm:$0xf]
          %v927 = vld [vmem:[#allocation11 + $0x1c] sm:$0xf]
          %v930 = vunpack.c.l.b16 %v922
          %v931 = vunpack.c.l.b16 %v923
          %v932 = vpack.c.b16 %v931, %v930
          %v935 = vsel %vm369, %v917, 0
          %937 = vmatprep.subr.bf16.mxu0 0
          %938 = vmatpush1.bf16.msra.mxu0 %v932
          %939 = vmatprep.subr.bf16.mxu0 0
          %940 = vmatpush1.bf16.msra.mxu0 0
          %941 = vmatprep.subr.bf16.mxu0 0
          %942 = vmatpush1.bf16.msra.mxu0 0
          %943 = vmatprep.subr.bf16.mxu0 0
          %944 = vmatpush1.bf16.msra.mxu0 0
          %945 = vmatprep.subr.bf16.mxu0 0
          %946 = vmatpush1.bf16.msra.mxu0 0
          %947 = vmatprep.subr.bf16.mxu0 0
          %948 = vmatpush1.bf16.msra.mxu0 0
          %949 = vmatprep.subr.bf16.mxu0 0
          %950 = vmatpush1.bf16.msra.mxu0 0
          %951 = vmatprep.subr.bf16.mxu0 0
          %952 = vmatpush1.bf16.msra.mxu0 0
          %953 = vmatprep.subr.bf16.mxu0 0
          %954 = vmatpush1.bf16.msra.mxu0 0
          %955 = vmatprep.subr.bf16.mxu0 0
          %956 = vmatpush1.bf16.msra.mxu0 0
          %957 = vmatprep.subr.bf16.mxu0 0
          %958 = vmatpush1.bf16.msra.mxu0 0
          %959 = vmatprep.subr.bf16.mxu0 0
          %960 = vmatpush1.bf16.msra.mxu0 0
          %961 = vmatprep.subr.bf16.mxu0 0
          %962 = vmatpush1.bf16.msra.mxu0 0
          %963 = vmatprep.subr.bf16.mxu0 0
          %964 = vmatpush1.bf16.msra.mxu0 0
          %965 = vmatprep.subr.bf16.mxu0 0
          %966 = vmatpush1.bf16.msra.mxu0 0
          %967 = vmatprep.subr.bf16.mxu0 0
          %968 = vmatpush1.bf16.msra.mxu0 0
          %969 = vmatprep.mubr.bf16.mxu0 0
          %970 = vmatmul.mubr.bf16.gmra.mrb[0].mxu0 %v935
          %v971 = vpop.f32.mrb[0].mxu0
          %v972 = vadd.f32 0.0, %v971
          %v973 = vpop.f32.mrb[0].mxu0
          %v974 = vpop.f32.mrb[0].mxu0
          %v975 = vpop.f32.mrb[0].mxu0
          %976 = vdwg.mxu0
          %v979 = vunpack.c.l.b16 %v920
          %v980 = vunpack.c.l.b16 %v921
          %v981 = vpack.c.b16 %v980, %v979
          %v984 = vsel %vm369, %v916, 0
          %986 = vmatprep.subr.bf16.mxu0 0
          %987 = vmatpush1.bf16.msra.mxu0 %v981
          %988 = vmatprep.subr.bf16.mxu0 0
          %989 = vmatpush1.bf16.msra.mxu0 0
          %990 = vmatprep.subr.bf16.mxu0 0
          %991 = vmatpush1.bf16.msra.mxu0 0
          %992 = vmatprep.subr.bf16.mxu0 0
          %993 = vmatpush1.bf16.msra.mxu0 0
          %994 = vmatprep.subr.bf16.mxu0 0
          %995 = vmatpush1.bf16.msra.mxu0 0
          %996 = vmatprep.subr.bf16.mxu0 0
          %997 = vmatpush1.bf16.msra.mxu0 0
          %998 = vmatprep.subr.bf16.mxu0 0
          %999 = vmatpush1.bf16.msra.mxu0 0
          %1000 = vmatprep.subr.bf16.mxu0 0
          %1001 = vmatpush1.bf16.msra.mxu0 0
          %1002 = vmatprep.subr.bf16.mxu0 0
          %1003 = vmatpush1.bf16.msra.mxu0 0
          %1004 = vmatprep.subr.bf16.mxu0 0
          %1005 = vmatpush1.bf16.msra.mxu0 0
          %1006 = vmatprep.subr.bf16.mxu0 0
          %1007 = vmatpush1.bf16.msra.mxu0 0
          %1008 = vmatprep.subr.bf16.mxu0 0
          %1009 = vmatpush1.bf16.msra.mxu0 0
          %1010 = vmatprep.subr.bf16.mxu0 0
          %1011 = vmatpush1.bf16.msra.mxu0 0
          %1012 = vmatprep.subr.bf16.mxu0 0
          %1013 = vmatpush1.bf16.msra.mxu0 0
          %1014 = vmatprep.subr.bf16.mxu0 0
          %1015 = vmatpush1.bf16.msra.mxu0 0
          %1016 = vmatprep.subr.bf16.mxu0 0
          %1017 = vmatpush1.bf16.msra.mxu0 0
          %1018 = vmatprep.mubr.bf16.mxu0 0
          %1019 = vmatmul.mubr.bf16.gmra.mrb[0].mxu0 %v984
          %v1020 = vpop.f32.mrb[0].mxu0
          %v1021 = vadd.f32 %v972, %v1020
          %v1022 = vpop.f32.mrb[0].mxu0
          %v1023 = vpop.f32.mrb[0].mxu0
          %v1024 = vpop.f32.mrb[0].mxu0
          %1025 = vdwg.mxu0
          %v1028 = vunpack.c.l.b16 %v924
          %v1029 = vunpack.c.l.b16 %v925
          %v1030 = vpack.c.b16 %v1029, %v1028
          %v1033 = vsel %vm369, %v918, 0
          %1035 = vmatprep.subr.bf16.mxu0 0
          %1036 = vmatpush1.bf16.msra.mxu0 %v1030
          %1037 = vmatprep.subr.bf16.mxu0 0
          %1038 = vmatpush1.bf16.msra.mxu0 0
          %1039 = vmatprep.subr.bf16.mxu0 0
          %1040 = vmatpush1.bf16.msra.mxu0 0
          %1041 = vmatprep.subr.bf16.mxu0 0
          %1042 = vmatpush1.bf16.msra.mxu0 0
          %1043 = vmatprep.subr.bf16.mxu0 0
          %1044 = vmatpush1.bf16.msra.mxu0 0
          %1045 = vmatprep.subr.bf16.mxu0 0
          %1046 = vmatpush1.bf16.msra.mxu0 0
          %1047 = vmatprep.subr.bf16.mxu0 0
          %1048 = vmatpush1.bf16.msra.mxu0 0
          %1049 = vmatprep.subr.bf16.mxu0 0
          %1050 = vmatpush1.bf16.msra.mxu0 0
          %1051 = vmatprep.subr.bf16.mxu0 0
          %1052 = vmatpush1.bf16.msra.mxu0 0
          %1053 = vmatprep.subr.bf16.mxu0 0
          %1054 = vmatpush1.bf16.msra.mxu0 0
          %1055 = vmatprep.subr.bf16.mxu0 0
          %1056 = vmatpush1.bf16.msra.mxu0 0
          %1057 = vmatprep.subr.bf16.mxu0 0
          %1058 = vmatpush1.bf16.msra.mxu0 0
          %1059 = vmatprep.subr.bf16.mxu0 0
          %1060 = vmatpush1.bf16.msra.mxu0 0
          %1061 = vmatprep.subr.bf16.mxu0 0
          %1062 = vmatpush1.bf16.msra.mxu0 0
          %1063 = vmatprep.subr.bf16.mxu0 0
          %1064 = vmatpush1.bf16.msra.mxu0 0
          %1065 = vmatprep.subr.bf16.mxu0 0
          %1066 = vmatpush1.bf16.msra.mxu0 0
          %1067 = vmatprep.mubr.bf16.mxu0 0
          %1068 = vmatmul.mubr.bf16.gmra.mrb[0].mxu0 %v1033
          %v1069 = vpop.f32.mrb[0].mxu0
          %v1070 = vadd.f32 0.0, %v1069
          %v1071 = vpop.f32.mrb[0].mxu0
          %v1072 = vpop.f32.mrb[0].mxu0
          %v1073 = vpop.f32.mrb[0].mxu0
          %1074 = vdwg.mxu0
          %v1075 = vadd.f32 %v1021, %v1070
          %v1078 = vunpack.c.l.b16 %v926
          %v1079 = vunpack.c.l.b16 %v927
          %v1080 = vpack.c.b16 %v1079, %v1078
          %v1083 = vsel %vm369, %v919, 0
          %1085 = vmatprep.subr.bf16.mxu0 0
          %1086 = vmatpush1.bf16.msra.mxu0 %v1080
          %1087 = vmatprep.subr.bf16.mxu0 0
          %1088 = vmatpush1.bf16.msra.mxu0 0
          %1089 = vmatprep.subr.bf16.mxu0 0
          %1090 = vmatpush1.bf16.msra.mxu0 0
          %1091 = vmatprep.subr.bf16.mxu0 0
          %1092 = vmatpush1.bf16.msra.mxu0 0
          %1093 = vmatprep.subr.bf16.mxu0 0
          %1094 = vmatpush1.bf16.msra.mxu0 0
          %1095 = vmatprep.subr.bf16.mxu0 0
          %1096 = vmatpush1.bf16.msra.mxu0 0
          %1097 = vmatprep.subr.bf16.mxu0 0
          %1098 = vmatpush1.bf16.msra.mxu0 0
          %1099 = vmatprep.subr.bf16.mxu0 0
          %1100 = vmatpush1.bf16.msra.mxu0 0
          %1101 = vmatprep.subr.bf16.mxu0 0
          %1102 = vmatpush1.bf16.msra.mxu0 0
          %1103 = vmatprep.subr.bf16.mxu0 0
          %1104 = vmatpush1.bf16.msra.mxu0 0
          %1105 = vmatprep.subr.bf16.mxu0 0
          %1106 = vmatpush1.bf16.msra.mxu0 0
          %1107 = vmatprep.subr.bf16.mxu0 0
          %1108 = vmatpush1.bf16.msra.mxu0 0
          %1109 = vmatprep.subr.bf16.mxu0 0
          %1110 = vmatpush1.bf16.msra.mxu0 0
          %1111 = vmatprep.subr.bf16.mxu0 0
          %1112 = vmatpush1.bf16.msra.mxu0 0
          %1113 = vmatprep.subr.bf16.mxu0 0
          %1114 = vmatpush1.bf16.msra.mxu0 0
          %1115 = vmatprep.subr.bf16.mxu0 0
          %1116 = vmatpush1.bf16.msra.mxu0 0
          %1117 = vmatprep.mubr.bf16.mxu0 0
          %1118 = vmatmul.mubr.bf16.gmra.mrb[0].mxu0 %v1083
          %v1119 = vpop.f32.mrb[0].mxu0
          %v1120 = vadd.f32 0.0, %v1119
          %v1121 = vpop.f32.mrb[0].mxu0
          %v1122 = vpop.f32.mrb[0].mxu0
          %v1123 = vpop.f32.mrb[0].mxu0
          %1124 = vdwg.mxu0
          %v1125 = vadd.f32 %v1075, %v1120
          %v1126 = vpack.c.bf16 %v1125, %v1125
          %1127 = vst [vmem:[%s337] sm:$0xf] %v1126
        $region60: #{tpu_custom_call.1} parent=35 // pred_fallthru
          _
        %s1128 = sand.u32 %s159, 1
        %s1129 = scalar_lea.sflag [#allocation7], %s1128
        %s1130 = sand.u32 %s159, 1
        %s1131 = smul.addr %s1130, 4
        %s1132 = scalar_lea.vmem [#allocation13], %s1131
        // Predicated region
        $region61: #{tpu_custom_call.1} parent=35 // pred_check
          %p1133 = pneg %p169
        $region62: #{tpu_custom_call.1} parent=35 // pred_check_branch
          %1135 = sbr.rel (%p1133) target = $region64
        $region63: #{tpu_custom_call.1} parent=35 // pred_region
          %s1137 = ssub.s32 64, 64
          %1138 = vsyncadd %s1129, %s1137
          %s1139 = sadd.s32 %s31, %s30
          %s1140 = smul.addr %s1139, 64
          %s1141 = scalar_lea.hbm %s4, %s1140
          %s1143 = sshll.u32 %s1132, 4
          %s1144 = int_to_ptr.vmem [resolvable:$true] %s1143
          %1146 = dma.vmem_to_hbm [thread:$0]  %s1144, 64, %s1141, %s1129
        $region64: #{tpu_custom_call.1} parent=35 // pred_fallthru
          _
      $region36: #{tpu_custom_call.1} parent=5 // pred_fallthru
        _
      %p1147 = scmp.le.s32.totalorder 2, %s20
      // Predicated region
      $region65: #{tpu_custom_call.1} parent=5 // pred_check
        %p1148 = pneg %p1147
      $region66: #{tpu_custom_call.1} parent=5 // pred_check_branch
        %1150 = sbr.rel (%p1148) target = $region68
      $region67: #{tpu_custom_call.1} parent=5 // pred_region
        %s1151 = ssub.s32 %s20, 2
        // Predicated region
        $region69: #{tpu_custom_call.1} parent=67 // pred_check
          %p1152 = pneg %p175
        $region70: #{tpu_custom_call.1} parent=67 // pred_check_branch
          %1154 = sbr.rel (%p1152) target = $region72
        $region71: #{tpu_custom_call.1} parent=67 // pred_region
          %s1155 = sand.u32 %s160, 1
          %s1156 = scalar_lea.sflag [#allocation7], %s1155
          %s1157 = sand.u32 %s160, 1
          %s1158 = smul.addr %s1157, 4
          %s1159 = scalar_lea.vmem [#allocation13], %s1158
          %1160 = dma.done %s1156, 64
        $region72: #{tpu_custom_call.1} parent=67 // pred_fallthru
          _
      $region68: #{tpu_custom_call.1} parent=5 // pred_fallthru
        _
    $region6: #{tpu_custom_call.1} parent=1 // loop_footer
      %s24 = sadd.s32 1, %s20
    $region7: #{tpu_custom_call.1} parent=1 // loop_footer_branch
      %19 = sbr.rel target = $region3
    $region8: #{tpu_custom_call.1} parent=1 // loop_exit
      _
    %1161 = vsyncpa [#allocation6], 1
    %s1162 = scalar_lea.sflag [#allocation6], 1
    %1163 = vsyncpa %s1162, 1
    %1164 = vsyncpa [#allocation9], 1
    %s1165 = scalar_lea.sflag [#allocation9], 1
    %1166 = vsyncpa %s1165, 1
    %1167 = vsyncpa [#allocation12], 1
    %1168 = vsyncpa [#allocation7], 1
    %s1169 = scalar_lea.sflag [#allocation7], 1
    %1170 = vsyncpa %s1169, 1

</llo_original>
